<compile_context>
chip_gen: v6e
topology: v6e:2x2x1
jax: 0.10.0
libtpu: 0.0.40
codegen_flags: <defaults>
</compile_context>

<pallas_src>
import functools

import jax
import jax.numpy as jnp
from jax.experimental import pallas as pl
from jax.experimental.pallas import tpu as pltpu


def _fusion_kernel(q_in_ref, k_in_ref, v_in_ref, tgt_ref, mask_ref,
                   w_ref, b_ref, out_ref, *, nhead, head_dim):
    f32 = jnp.float32
    cdt = w_ref.dtype                      # matmul-operand dtype (f32 or bf16)

    q_in = q_in_ref[0]                     # (blk, E)
    k_in = k_in_ref[0]                     # (Lm,  E)
    v_in = v_in_ref[0]                     # (Lm,  E)
    mask = mask_ref[0]                     # (1,   Lm) additive key-pad mask, f32
    b_all = b_ref[...].astype(f32)         # (4,   E)  [bq*scale, bk, bv, bo]

    # Lane-dense input projections: single 2-D matmuls with f32 accumulation.
    # Wq / bq were pre-scaled by 1/sqrt(head_dim) in the wrapper.
    q2 = jnp.dot(q_in, w_ref[0], preferred_element_type=f32) + b_all[0:1, :]
    k2 = jnp.dot(k_in, w_ref[1], preferred_element_type=f32) + b_all[1:2, :]
    v2 = jnp.dot(v_in, w_ref[2], preferred_element_type=f32) + b_all[2:3, :]

    # Per-head attention: statically unrolled loop of 2-D ops.  Scores, the
    # mask add and the softmax stay in f32 (keeps -1e9 masking exact).
    head_outs = []
    for h in range(nhead):
        sl = slice(h * head_dim, (h + 1) * head_dim)
        q_h = q2[:, sl].astype(cdt)                          # (blk, hd)
        k_h = k2[:, sl].astype(cdt)                          # (Lm,  hd)
        v_h = v2[:, sl].astype(cdt)                          # (Lm,  hd)
        s = jnp.einsum('qd,kd->qk', q_h, k_h,
                       preferred_element_type=f32)           # (blk, Lm)
        s = s + mask                                         # key padding
        s = s - jnp.max(s, axis=-1, keepdims=True)
        p = jnp.exp(s)
        p = p * pl.reciprocal(jnp.sum(p, axis=-1, keepdims=True), approx=True)
        head_outs.append(jnp.dot(p.astype(cdt), v_h,
                                 preferred_element_type=f32))  # (blk, hd)

    # Head recombination: lane concat + ONE output-projection matmul, so the
    # cross-head sum happens inside the MXU f32 accumulator (no VALU add chain
    # over per-head (blk, E) partials).
    o = jnp.concatenate(head_outs, axis=-1).astype(cdt)       # (blk, E)
    tgt2 = jnp.dot(o, w_ref[3], preferred_element_type=f32) + b_all[3:4, :]

    # Elementwise gate: tgt * tgt2.
    out_ref[0] = (tgt_ref[0].astype(f32) * tgt2).astype(out_ref.dtype)


def vision_language_fusion(tgt, memory, params, *, nhead,
                           memory_key_padding_mask=None, pos=None,
                           query_pos=None, compute_dtype=jnp.float32,
                           num_query_shards=None,
                           vmem_limit_bytes=32 * 1024 * 1024):
    """tgt: (Lt, N, E), memory: (Lm, N, E) — PyTorch seq-first layout.

    params = (Wq, Wk, Wv, Wo, bq, bk, bv, bo); W* in PyTorch (out, in) layout
    (E, E), b* of size E.
    compute_dtype: bfloat16 recommended at large shapes on all generations
      (v5e/v6e/v7x MXUs are bf16-native); mask/softmax always stay f32.
    num_query_shards: None = auto (1 unless each shard keeps >= 128 query
      rows).  >1 only pays off on multi-TensorCore parts (v7x) at large Lt.
    """
    Lt, N, E = tgt.shape
    Lm = memory.shape[0]
    assert E % nhead == 0
    hd = E // nhead
    wq, wk, wv, wo, bq, bk, bv, bo = params
    f32 = jnp.float32

    # Gate query sharding on problem size: sharding duplicates k/v/weight DMA
    # per core and adds ~0.35 us/step of grid overhead, so it only pays off
    # once each shard still has hundreds of query rows.
    if num_query_shards is None:
        num_query_shards = 2 if (Lt % 2 == 0 and Lt // 2 >= 128) else 1
    S = num_query_shards
    assert Lt % S == 0, "Lt must divide evenly across query shards"
    blk = Lt // S
    if S > 1:
        assert blk % 8 == 0, "per-shard query block must be a multiple of 8"

    # Batch-major activations; pos adds fused here (free in XLA).
    q_in = tgt if query_pos is None else tgt + query_pos             # (Lt,N,E)
    k_in = memory if pos is None else memory + pos                   # (Lm,N,E)
    q_b = jnp.transpose(q_in, (1, 0, 2)).astype(compute_dtype)       # (N,Lt,E)
    k_b = jnp.transpose(k_in, (1, 0, 2)).astype(compute_dtype)       # (N,Lm,E)
    v_b = jnp.transpose(memory, (1, 0, 2)).astype(compute_dtype)     # (N,Lm,E)
    tgt_b = jnp.transpose(tgt, (1, 0, 2))                            # (N,Lt,E)

    # Pre-transposed weight / bias stacks (x @ W^T); 1/sqrt(hd) folded into the
    # query projection so the kernel never multiplies activations by the scale.
    scale = 1.0 / float(hd) ** 0.5
    w_all = jnp.stack([wq.T * scale, wk.T, wv.T, wo.T], 0).astype(compute_dtype)
    b_all = jnp.stack([bq * scale, bk, bv, bo], 0).astype(f32)        # (4, E)

    # Tiny per-batch additive key-padding mask, kept in f32: (N, 1, Lm).
    if memory_key_padding_mask is not None:
        add_mask = jnp.where(memory_key_padding_mask, -1e9, 0.0).astype(f32)
    else:
        add_mask = jnp.zeros((N, Lm), f32)
    add_mask = add_mask.reshape(N, 1, Lm)

    kernel = functools.partial(_fusion_kernel, nhead=nhead, head_dim=hd)
    out_b = pl.pallas_call(
        kernel,
        out_shape=jax.ShapeDtypeStruct((N, Lt, E), tgt.dtype),
        grid=(N, S),
        in_specs=[
            pl.BlockSpec((1, blk, E), lambda b, s: (b, s, 0)),   # q_in (tgt+query_pos)
            pl.BlockSpec((1, Lm, E), lambda b, s: (b, 0, 0)),    # k_in (memory+pos)
            pl.BlockSpec((1, Lm, E), lambda b, s: (b, 0, 0)),    # v_in (memory)
            pl.BlockSpec((1, blk, E), lambda b, s: (b, s, 0)),   # tgt (gate)
            pl.BlockSpec((1, 1, Lm), lambda b, s: (b, 0, 0)),    # additive mask
            pl.BlockSpec((4, E, E), lambda b, s: (0, 0, 0)),     # [WqT*s, WkT, WvT, WoT]
            pl.BlockSpec((4, E), lambda b, s: (0, 0)),           # [bq*s, bk, bv, bo]
        ],
        out_specs=pl.BlockSpec((1, blk, E), lambda b, s: (b, s, 0)),
        compiler_params=pltpu.CompilerParams(
            dimension_semantics=("parallel", "parallel"),
            vmem_limit_bytes=vmem_limit_bytes),
    )(q_b, k_b, v_b, tgt_b, add_mask, w_all, b_all)

    return jnp.transpose(out_b, (1, 0, 2))                       # back to (Lt, N, E)


def _reference(tgt, memory, params, nhead, key_padding_mask, pos, query_pos):
    """Pure-JAX reference of nn.MultiheadAttention forward + gating (f32)."""
    wq, wk, wv, wo, bq, bk, bv, bo = params
    Lt, N, E = tgt.shape
    Lm = memory.shape[0]
    hd = E // nhead
    q = jnp.einsum('lne,fe->lnf', tgt + query_pos, wq) + bq
    k = jnp.einsum('lne,fe->lnf', memory + pos, wk) + bk
    v = jnp.einsum('lne,fe->lnf', memory, wv) + bv
    qh = q.reshape(Lt, N, nhead, hd).transpose(1, 2, 0, 3)
    kh = k.reshape(Lm, N, nhead, hd).transpose(1, 2, 0, 3)
    vh = v.reshape(Lm, N, nhead, hd).transpose(1, 2, 0, 3)
    s = jnp.einsum('bhqd,bhkd->bhqk', qh, kh) / jnp.sqrt(hd)
    if key_padding_mask is not None:
        s = s + jnp.where(key_padding_mask, -1e9, 0.0)[:, None, None, :]
    p = jax.nn.softmax(s, axis=-1)
    o = jnp.einsum('bhqk,bhkd->bhqd', p, vh).transpose(2, 0, 1, 3).reshape(Lt, N, E)
    tgt2 = jnp.einsum('lne,fe->lnf', o, wo) + bo
    return tgt * tgt2


if __name__ == "__main__":
    d_model, nhead = 32, 4
    Lt, Lm, N = 16, 8, 2     # tgt (vision) length, memory (text) length, batch

    key = jax.random.PRNGKey(0)
    ks = jax.random.split(key, 8)
    tgt = jax.random.normal(ks[0], (Lt, N, d_model), jnp.float32)
    memory = jax.random.normal(ks[1], (Lm, N, d_model), jnp.float32)
    query_pos = jax.random.normal(ks[2], (Lt, N, d_model), jnp.float32)
    pos = jax.random.normal(ks[3], (Lm, N, d_model), jnp.float32)
    # key_padding_mask: True = padded (ignored). Pad last 2 keys of batch 1.
    key_padding_mask = jnp.zeros((N, Lm), jnp.bool_).at[1, -2:].set(True)

    # Deterministic synthetic parameters (nn.MultiheadAttention shapes):
    #   in_proj_weight (3E, E), in_proj_bias (3E,), out_proj (E, E) + (E,)
    in_proj_w = 0.1 * jax.random.normal(ks[4], (3 * d_model, d_model), jnp.float32)
    in_proj_b = 0.05 * jax.random.normal(ks[5], (3 * d_model,), jnp.float32)
    out_w = 0.1 * jax.random.normal(ks[6], (d_model, d_model), jnp.float32)
    out_b = 0.05 * jax.random.normal(ks[7], (d_model,), jnp.float32)
    params = (
        in_proj_w[:d_model], in_proj_w[d_model:2 * d_model], in_proj_w[2 * d_model:],
        out_w,
        in_proj_b[:d_model], in_proj_b[d_model:2 * d_model], in_proj_b[2 * d_model:],
        out_b,
    )

    ref = _reference(tgt, memory, params, nhead, key_padding_mask, pos, query_pos)

    # Default: auto-gated to 1 query shard per batch at this demo size
    # (batch-parallel grid only).
    out = vision_language_fusion(
        tgt, memory, params, nhead=nhead,
        memory_key_padding_mask=key_padding_mask, pos=pos, query_pos=query_pos)
    out = jax.block_until_ready(out)
    assert out.shape == (Lt, N, d_model)
    assert jnp.allclose(out, ref, rtol=2e-3, atol=2e-3), "kernel mismatch (auto)"

    # Explicit 2-way query sharding: correctness coverage of the sharded grid
    # path (perf-wise this only pays off at large Lt on multi-core parts).
    out2 = vision_language_fusion(
        tgt, memory, params, nhead=nhead,
        memory_key_padding_mask=key_padding_mask, pos=pos, query_pos=query_pos,
        num_query_shards=2)
    out2 = jax.block_until_ready(out2)
    assert jnp.allclose(out2, ref, rtol=2e-3, atol=2e-3), "kernel mismatch (2 shards)"

    print("KERNEL_OK")
</pallas_src>

<mosaic_0001>
module attributes {stable_mosaic.version = 11 : i64} {
  func.func @_fusion_kernel(%arg0: i32, %arg1: i32, %arg2: memref<1x16x32xf32, #tpu.memory_space<vmem>>, %arg3: memref<1x8x32xf32, #tpu.memory_space<vmem>>, %arg4: memref<1x8x32xf32, #tpu.memory_space<vmem>>, %arg5: memref<1x16x32xf32, #tpu.memory_space<vmem>>, %arg6: memref<1x1x8xf32, #tpu.memory_space<vmem>>, %arg7: memref<4x32x32xf32, #tpu.memory_space<vmem>>, %arg8: memref<4x32xf32, #tpu.memory_space<vmem>>, %arg9: memref<1x16x32xf32, #tpu.memory_space<vmem>>) attributes {dimension_semantics = [#tpu.dimension_semantics<parallel>, #tpu.dimension_semantics<parallel>], iteration_bounds = array<i64: 2, 1>, scalar_prefetch = 0 : i64, scratch_operands = 0 : i64, tpu.core_type = #tpu.core_type<tc>, window_params = [{transform_indices = @transform_0, window_bounds = array<i64: 1, 16, 32>}, {transform_indices = @transform_1, window_bounds = array<i64: 1, 8, 32>}, {transform_indices = @transform_2, window_bounds = array<i64: 1, 8, 32>}, {transform_indices = @transform_3, window_bounds = array<i64: 1, 16, 32>}, {transform_indices = @transform_4, window_bounds = array<i64: 1, 1, 8>}, {pipeline_mode = #tpu.pipeline_mode<synchronous>, transform_indices = @transform_5, window_bounds = array<i64: 4, 32, 32>}, {pipeline_mode = #tpu.pipeline_mode<synchronous>, transform_indices = @transform_6, window_bounds = array<i64: 4, 32>}, {transform_indices = @transform_7, window_bounds = array<i64: 1, 16, 32>}]} {
    %c0 = arith.constant 0 : index
    %c0_0 = arith.constant 0 : index
    %c0_1 = arith.constant 0 : index
    %0 = vector.load %arg2[%c0, %c0_0, %c0_1] : memref<1x16x32xf32, #tpu.memory_space<vmem>>, vector<1x16x32xf32>
    %1 = vector.shape_cast %0 : vector<1x16x32xf32> to vector<16x32xf32>
    %c0_2 = arith.constant 0 : index
    %c0_3 = arith.constant 0 : index
    %c0_4 = arith.constant 0 : index
    %2 = vector.load %arg3[%c0_2, %c0_3, %c0_4] : memref<1x8x32xf32, #tpu.memory_space<vmem>>, vector<1x8x32xf32>
    %3 = vector.shape_cast %2 : vector<1x8x32xf32> to vector<8x32xf32>
    %c0_5 = arith.constant 0 : index
    %c0_6 = arith.constant 0 : index
    %c0_7 = arith.constant 0 : index
    %4 = vector.load %arg4[%c0_5, %c0_6, %c0_7] : memref<1x8x32xf32, #tpu.memory_space<vmem>>, vector<1x8x32xf32>
    %5 = vector.shape_cast %4 : vector<1x8x32xf32> to vector<8x32xf32>
    %c0_8 = arith.constant 0 : index
    %c0_9 = arith.constant 0 : index
    %c0_10 = arith.constant 0 : index
    %6 = vector.load %arg6[%c0_8, %c0_9, %c0_10] : memref<1x1x8xf32, #tpu.memory_space<vmem>>, vector<1x1x8xf32>
    %7 = vector.shape_cast %6 : vector<1x1x8xf32> to vector<1x8xf32>
    %c0_11 = arith.constant 0 : index
    %c0_12 = arith.constant 0 : index
    %8 = vector.load %arg8[%c0_11, %c0_12] : memref<4x32xf32, #tpu.memory_space<vmem>>, vector<4x32xf32>
    %c0_13 = arith.constant 0 : index
    %c0_14 = arith.constant 0 : index
    %c0_15 = arith.constant 0 : index
    %9 = vector.load %arg7[%c0_13, %c0_14, %c0_15] : memref<4x32x32xf32, #tpu.memory_space<vmem>>, vector<1x32x32xf32>
    %10 = vector.shape_cast %9 : vector<1x32x32xf32> to vector<32x32xf32>
    %cst = arith.constant dense<0.000000e+00> : vector<16x32xf32>
    %11 = tpu.matmul %1, %10, %cst {dimension_numbers = #tpu.dot_dimension_numbers<[1], [0], [0], [1], [0, 0, 1, 1], [], []>} : vector<16x32xf32>, vector<32x32xf32>, vector<16x32xf32> -> vector<16x32xf32>
    %12 = vector.extract_strided_slice %8 {offsets = [0, 0], sizes = [1, 32], strides = [1, 1]} : vector<4x32xf32> to vector<1x32xf32>
    %13 = vector.broadcast %12 : vector<1x32xf32> to vector<16x32xf32>
    %14 = arith.addf %11, %13 : vector<16x32xf32>
    %c1 = arith.constant 1 : index
    %c0_16 = arith.constant 0 : index
    %c0_17 = arith.constant 0 : index
    %15 = vector.load %arg7[%c1, %c0_16, %c0_17] : memref<4x32x32xf32, #tpu.memory_space<vmem>>, vector<1x32x32xf32>
    %16 = vector.shape_cast %15 : vector<1x32x32xf32> to vector<32x32xf32>
    %cst_18 = arith.constant dense<0.000000e+00> : vector<8x32xf32>
    %17 = tpu.matmul %3, %16, %cst_18 {dimension_numbers = #tpu.dot_dimension_numbers<[1], [0], [0], [1], [0, 0, 1, 1], [], []>} : vector<8x32xf32>, vector<32x32xf32>, vector<8x32xf32> -> vector<8x32xf32>
    %18 = vector.extract_strided_slice %8 {offsets = [1, 0], sizes = [1, 32], strides = [1, 1]} : vector<4x32xf32> to vector<1x32xf32>
    %19 = vector.broadcast %18 : vector<1x32xf32> to vector<8x32xf32>
    %20 = arith.addf %17, %19 : vector<8x32xf32>
    %c2 = arith.constant 2 : index
    %c0_19 = arith.constant 0 : index
    %c0_20 = arith.constant 0 : index
    %21 = vector.load %arg7[%c2, %c0_19, %c0_20] : memref<4x32x32xf32, #tpu.memory_space<vmem>>, vector<1x32x32xf32>
    %22 = vector.shape_cast %21 : vector<1x32x32xf32> to vector<32x32xf32>
    %cst_21 = arith.constant dense<0.000000e+00> : vector<8x32xf32>
    %23 = tpu.matmul %5, %22, %cst_21 {dimension_numbers = #tpu.dot_dimension_numbers<[1], [0], [0], [1], [0, 0, 1, 1], [], []>} : vector<8x32xf32>, vector<32x32xf32>, vector<8x32xf32> -> vector<8x32xf32>
    %24 = vector.extract_strided_slice %8 {offsets = [2, 0], sizes = [1, 32], strides = [1, 1]} : vector<4x32xf32> to vector<1x32xf32>
    %25 = vector.broadcast %24 : vector<1x32xf32> to vector<8x32xf32>
    %26 = arith.addf %23, %25 : vector<8x32xf32>
    %27 = vector.extract_strided_slice %14 {offsets = [0, 0], sizes = [16, 8], strides = [1, 1]} : vector<16x32xf32> to vector<16x8xf32>
    %28 = vector.extract_strided_slice %20 {offsets = [0, 0], sizes = [8, 8], strides = [1, 1]} : vector<8x32xf32> to vector<8x8xf32>
    %29 = vector.extract_strided_slice %26 {offsets = [0, 0], sizes = [8, 8], strides = [1, 1]} : vector<8x32xf32> to vector<8x8xf32>
    "tpu.trace_start"() <{level = 10 : i32, message = "qd,kd->qk"}> : () -> ()
    %cst_22 = arith.constant dense<0.000000e+00> : vector<16x8xf32>
    %30 = tpu.matmul %27, %28, %cst_22 {dimension_numbers = #tpu.dot_dimension_numbers<[1], [1], [0], [0], [0, 0, 1, 0], [], []>} : vector<16x8xf32>, vector<8x8xf32>, vector<16x8xf32> -> vector<16x8xf32>
    "tpu.trace_stop"() : () -> ()
    %31 = vector.broadcast %7 : vector<1x8xf32> to vector<16x8xf32>
    %32 = arith.addf %30, %31 : vector<16x8xf32>
    %cst_23 = arith.constant dense<0xFF800000> : vector<16xf32>
    %33 = vector.multi_reduction <maximumf>, %32, %cst_23 [1] : vector<16x8xf32> to vector<16xf32>
    %34 = vector.shape_cast %33 : vector<16xf32> to vector<16x1xf32>
    %35 = vector.broadcast %34 : vector<16x1xf32> to vector<16x8xf32>
    %36 = arith.subf %32, %35 : vector<16x8xf32>
    %37 = math.exp %36 : vector<16x8xf32>
    %cst_24 = arith.constant dense<0.000000e+00> : vector<16xf32>
    %38 = vector.multi_reduction <add>, %37, %cst_24 [1] : vector<16x8xf32> to vector<16xf32>
    %39 = vector.shape_cast %38 : vector<16xf32> to vector<16x1xf32>
    %40 = tpu.reciprocal %39 {approx = true} : vector<16x1xf32> -> vector<16x1xf32>
    %41 = vector.broadcast %40 : vector<16x1xf32> to vector<16x8xf32>
    %42 = arith.mulf %37, %41 : vector<16x8xf32>
    %cst_25 = arith.constant dense<0.000000e+00> : vector<16x8xf32>
    %43 = tpu.matmul %42, %29, %cst_25 {dimension_numbers = #tpu.dot_dimension_numbers<[1], [0], [0], [1], [0, 0, 1, 1], [], []>} : vector<16x8xf32>, vector<8x8xf32>, vector<16x8xf32> -> vector<16x8xf32>
    %44 = vector.extract_strided_slice %14 {offsets = [0, 8], sizes = [16, 8], strides = [1, 1]} : vector<16x32xf32> to vector<16x8xf32>
    %45 = vector.extract_strided_slice %20 {offsets = [0, 8], sizes = [8, 8], strides = [1, 1]} : vector<8x32xf32> to vector<8x8xf32>
    %46 = vector.extract_strided_slice %26 {offsets = [0, 8], sizes = [8, 8], strides = [1, 1]} : vector<8x32xf32> to vector<8x8xf32>
    "tpu.trace_start"() <{level = 10 : i32, message = "qd,kd->qk"}> : () -> ()
    %cst_26 = arith.constant dense<0.000000e+00> : vector<16x8xf32>
    %47 = tpu.matmul %44, %45, %cst_26 {dimension_numbers = #tpu.dot_dimension_numbers<[1], [1], [0], [0], [0, 0, 1, 0], [], []>} : vector<16x8xf32>, vector<8x8xf32>, vector<16x8xf32> -> vector<16x8xf32>
    "tpu.trace_stop"() : () -> ()
    %48 = vector.broadcast %7 : vector<1x8xf32> to vector<16x8xf32>
    %49 = arith.addf %47, %48 : vector<16x8xf32>
    %cst_27 = arith.constant dense<0xFF800000> : vector<16xf32>
    %50 = vector.multi_reduction <maximumf>, %49, %cst_27 [1] : vector<16x8xf32> to vector<16xf32>
    %51 = vector.shape_cast %50 : vector<16xf32> to vector<16x1xf32>
    %52 = vector.broadcast %51 : vector<16x1xf32> to vector<16x8xf32>
    %53 = arith.subf %49, %52 : vector<16x8xf32>
    %54 = math.exp %53 : vector<16x8xf32>
    %cst_28 = arith.constant dense<0.000000e+00> : vector<16xf32>
    %55 = vector.multi_reduction <add>, %54, %cst_28 [1] : vector<16x8xf32> to vector<16xf32>
    %56 = vector.shape_cast %55 : vector<16xf32> to vector<16x1xf32>
    %57 = tpu.reciprocal %56 {approx = true} : vector<16x1xf32> -> vector<16x1xf32>
    %58 = vector.broadcast %57 : vector<16x1xf32> to vector<16x8xf32>
    %59 = arith.mulf %54, %58 : vector<16x8xf32>
    %cst_29 = arith.constant dense<0.000000e+00> : vector<16x8xf32>
    %60 = tpu.matmul %59, %46, %cst_29 {dimension_numbers = #tpu.dot_dimension_numbers<[1], [0], [0], [1], [0, 0, 1, 1], [], []>} : vector<16x8xf32>, vector<8x8xf32>, vector<16x8xf32> -> vector<16x8xf32>
    %61 = vector.extract_strided_slice %14 {offsets = [0, 16], sizes = [16, 8], strides = [1, 1]} : vector<16x32xf32> to vector<16x8xf32>
    %62 = vector.extract_strided_slice %20 {offsets = [0, 16], sizes = [8, 8], strides = [1, 1]} : vector<8x32xf32> to vector<8x8xf32>
    %63 = vector.extract_strided_slice %26 {offsets = [0, 16], sizes = [8, 8], strides = [1, 1]} : vector<8x32xf32> to vector<8x8xf32>
    "tpu.trace_start"() <{level = 10 : i32, message = "qd,kd->qk"}> : () -> ()
    %cst_30 = arith.constant dense<0.000000e+00> : vector<16x8xf32>
    %64 = tpu.matmul %61, %62, %cst_30 {dimension_numbers = #tpu.dot_dimension_numbers<[1], [1], [0], [0], [0, 0, 1, 0], [], []>} : vector<16x8xf32>, vector<8x8xf32>, vector<16x8xf32> -> vector<16x8xf32>
    "tpu.trace_stop"() : () -> ()
    %65 = vector.broadcast %7 : vector<1x8xf32> to vector<16x8xf32>
    %66 = arith.addf %64, %65 : vector<16x8xf32>
    %cst_31 = arith.constant dense<0xFF800000> : vector<16xf32>
    %67 = vector.multi_reduction <maximumf>, %66, %cst_31 [1] : vector<16x8xf32> to vector<16xf32>
    %68 = vector.shape_cast %67 : vector<16xf32> to vector<16x1xf32>
    %69 = vector.broadcast %68 : vector<16x1xf32> to vector<16x8xf32>
    %70 = arith.subf %66, %69 : vector<16x8xf32>
    %71 = math.exp %70 : vector<16x8xf32>
    %cst_32 = arith.constant dense<0.000000e+00> : vector<16xf32>
    %72 = vector.multi_reduction <add>, %71, %cst_32 [1] : vector<16x8xf32> to vector<16xf32>
    %73 = vector.shape_cast %72 : vector<16xf32> to vector<16x1xf32>
    %74 = tpu.reciprocal %73 {approx = true} : vector<16x1xf32> -> vector<16x1xf32>
    %75 = vector.broadcast %74 : vector<16x1xf32> to vector<16x8xf32>
    %76 = arith.mulf %71, %75 : vector<16x8xf32>
    %cst_33 = arith.constant dense<0.000000e+00> : vector<16x8xf32>
    %77 = tpu.matmul %76, %63, %cst_33 {dimension_numbers = #tpu.dot_dimension_numbers<[1], [0], [0], [1], [0, 0, 1, 1], [], []>} : vector<16x8xf32>, vector<8x8xf32>, vector<16x8xf32> -> vector<16x8xf32>
    %78 = vector.extract_strided_slice %14 {offsets = [0, 24], sizes = [16, 8], strides = [1, 1]} : vector<16x32xf32> to vector<16x8xf32>
    %79 = vector.extract_strided_slice %20 {offsets = [0, 24], sizes = [8, 8], strides = [1, 1]} : vector<8x32xf32> to vector<8x8xf32>
    %80 = vector.extract_strided_slice %26 {offsets = [0, 24], sizes = [8, 8], strides = [1, 1]} : vector<8x32xf32> to vector<8x8xf32>
    "tpu.trace_start"() <{level = 10 : i32, message = "qd,kd->qk"}> : () -> ()
    %cst_34 = arith.constant dense<0.000000e+00> : vector<16x8xf32>
    %81 = tpu.matmul %78, %79, %cst_34 {dimension_numbers = #tpu.dot_dimension_numbers<[1], [1], [0], [0], [0, 0, 1, 0], [], []>} : vector<16x8xf32>, vector<8x8xf32>, vector<16x8xf32> -> vector<16x8xf32>
    "tpu.trace_stop"() : () -> ()
    %82 = vector.broadcast %7 : vector<1x8xf32> to vector<16x8xf32>
    %83 = arith.addf %81, %82 : vector<16x8xf32>
    %cst_35 = arith.constant dense<0xFF800000> : vector<16xf32>
    %84 = vector.multi_reduction <maximumf>, %83, %cst_35 [1] : vector<16x8xf32> to vector<16xf32>
    %85 = vector.shape_cast %84 : vector<16xf32> to vector<16x1xf32>
    %86 = vector.broadcast %85 : vector<16x1xf32> to vector<16x8xf32>
    %87 = arith.subf %83, %86 : vector<16x8xf32>
    %88 = math.exp %87 : vector<16x8xf32>
    %cst_36 = arith.constant dense<0.000000e+00> : vector<16xf32>
    %89 = vector.multi_reduction <add>, %88, %cst_36 [1] : vector<16x8xf32> to vector<16xf32>
    %90 = vector.shape_cast %89 : vector<16xf32> to vector<16x1xf32>
    %91 = tpu.reciprocal %90 {approx = true} : vector<16x1xf32> -> vector<16x1xf32>
    %92 = vector.broadcast %91 : vector<16x1xf32> to vector<16x8xf32>
    %93 = arith.mulf %88, %92 : vector<16x8xf32>
    %cst_37 = arith.constant dense<0.000000e+00> : vector<16x8xf32>
    %94 = tpu.matmul %93, %80, %cst_37 {dimension_numbers = #tpu.dot_dimension_numbers<[1], [0], [0], [1], [0, 0, 1, 1], [], []>} : vector<16x8xf32>, vector<8x8xf32>, vector<16x8xf32> -> vector<16x8xf32>
    %95 = tpu.concatenate %43, %60, %77, %94 in 1 : vector<16x8xf32>, vector<16x8xf32>, vector<16x8xf32>, vector<16x8xf32> -> vector<16x32xf32>
    %c3 = arith.constant 3 : index
    %c0_38 = arith.constant 0 : index
    %c0_39 = arith.constant 0 : index
    %96 = vector.load %arg7[%c3, %c0_38, %c0_39] : memref<4x32x32xf32, #tpu.memory_space<vmem>>, vector<1x32x32xf32>
    %97 = vector.shape_cast %96 : vector<1x32x32xf32> to vector<32x32xf32>
    %cst_40 = arith.constant dense<0.000000e+00> : vector<16x32xf32>
    %98 = tpu.matmul %95, %97, %cst_40 {dimension_numbers = #tpu.dot_dimension_numbers<[1], [0], [0], [1], [0, 0, 1, 1], [], []>} : vector<16x32xf32>, vector<32x32xf32>, vector<16x32xf32> -> vector<16x32xf32>
    %99 = vector.extract_strided_slice %8 {offsets = [3, 0], sizes = [1, 32], strides = [1, 1]} : vector<4x32xf32> to vector<1x32xf32>
    %100 = vector.broadcast %99 : vector<1x32xf32> to vector<16x32xf32>
    %101 = arith.addf %98, %100 : vector<16x32xf32>
    %c0_41 = arith.constant 0 : index
    %c0_42 = arith.constant 0 : index
    %c0_43 = arith.constant 0 : index
    %102 = vector.load %arg5[%c0_41, %c0_42, %c0_43] : memref<1x16x32xf32, #tpu.memory_space<vmem>>, vector<1x16x32xf32>
    %103 = vector.shape_cast %102 : vector<1x16x32xf32> to vector<16x32xf32>
    %104 = arith.mulf %103, %101 : vector<16x32xf32>
    %c0_44 = arith.constant 0 : index
    %c0_45 = arith.constant 0 : index
    %c0_46 = arith.constant 0 : index
    %105 = vector.load %arg9[%c0_44, %c0_45, %c0_46] : memref<1x16x32xf32, #tpu.memory_space<vmem>>, vector<1x16x32xf32>
    %106 = vector.shape_cast %105 : vector<1x16x32xf32> to vector<16x32xf32>
    %107 = vector.shape_cast %104 : vector<16x32xf32> to vector<1x16x32xf32>
    tpu.vector_store %arg9[%c0_44, %c0_45, %c0_46], %107 {strides = array<i32>} : memref<1x16x32xf32, #tpu.memory_space<vmem>>, vector<1x16x32xf32>,
    return
  }
  func.func @transform_0(%arg0: i32, %arg1: i32) -> (i32, i32, i32) {
    %c0_i32 = arith.constant 0 : i32
    %c0_i32_0 = arith.constant 0 : i32
    return %arg0, %arg1, %c0_i32 : i32, i32, i32
  }
  func.func @transform_1(%arg0: i32, %arg1: i32) -> (i32, i32, i32) {
    %c0_i32 = arith.constant 0 : i32
    %c0_i32_0 = arith.constant 0 : i32
    %c0_i32_1 = arith.constant 0 : i32
    return %arg0, %c0_i32, %c0_i32_0 : i32, i32, i32
  }
  func.func @transform_2(%arg0: i32, %arg1: i32) -> (i32, i32, i32) {
    %c0_i32 = arith.constant 0 : i32
    %c0_i32_0 = arith.constant 0 : i32
    %c0_i32_1 = arith.constant 0 : i32
    return %arg0, %c0_i32, %c0_i32_0 : i32, i32, i32
  }
  func.func @transform_3(%arg0: i32, %arg1: i32) -> (i32, i32, i32) {
    %c0_i32 = arith.constant 0 : i32
    %c0_i32_0 = arith.constant 0 : i32
    return %arg0, %arg1, %c0_i32 : i32, i32, i32
  }
  func.func @transform_4(%arg0: i32, %arg1: i32) -> (i32, i32, i32) {
    %c0_i32 = arith.constant 0 : i32
    %c0_i32_0 = arith.constant 0 : i32
    %c0_i32_1 = arith.constant 0 : i32
    return %arg0, %c0_i32, %c0_i32_0 : i32, i32, i32
  }
  func.func @transform_5(%arg0: i32, %arg1: i32) -> (i32, i32, i32) {
    %c0_i32 = arith.constant 0 : i32
    %c0_i32_0 = arith.constant 0 : i32
    %c0_i32_1 = arith.constant 0 : i32
    %c0_i32_2 = arith.constant 0 : i32
    return %c0_i32, %c0_i32_0, %c0_i32_1 : i32, i32, i32
  }
  func.func @transform_6(%arg0: i32, %arg1: i32) -> (i32, i32) {
    %c0_i32 = arith.constant 0 : i32
    %c0_i32_0 = arith.constant 0 : i32
    %c0_i32_1 = arith.constant 0 : i32
    return %c0_i32, %c0_i32_0 : i32, i32
  }
  func.func @transform_7(%arg0: i32, %arg1: i32) -> (i32, i32, i32) {
    %c0_i32 = arith.constant 0 : i32
    %c0_i32_0 = arith.constant 0 : i32
    return %arg0, %arg1, %c0_i32 : i32, i32, i32
  }
}

</mosaic_0001>

<llo_original>
// kernel: tpu_custom_call.1
$region0: #{tpu_custom_call.1}
  #allocation0 [shape = 'u32[]', space=smem, size = 0x4, offset = 0x4, fixed_abs, tag = 'smem constant byte address 0x4 - core index']
  #allocation1 [shape = 'u32[144,128]{1,0:T(1,128)}', space=vmem, size = 0x12000, scoped, tag = 'internal scratch']
  %s0 = inlined_call_operand.hbm [shape: f32[2,16,32], index: 0, kind: input, shape index: {}]
  %s1 = inlined_call_operand.hbm [shape: f32[2,8,32], index: 1, kind: input, shape index: {}]
  %s2 = inlined_call_operand.hbm [shape: f32[2,8,32], index: 2, kind: input, shape index: {}]
  %s3 = inlined_call_operand.hbm [shape: f32[2,16,32], index: 3, kind: input, shape index: {}]
  %s4 = inlined_call_operand.vmem [shape: f32[2,1,8], index: 4, kind: input, shape index: {}]
  %s5 = inlined_call_operand.hbm [shape: f32[4,32,32], index: 5, kind: input, shape index: {}]
  %s6 = inlined_call_operand.vmem [shape: f32[4,32], index: 6, kind: input, shape index: {}]
  %s7 = inlined_call_operand.hbm [shape: f32[2,16,32], index: 7, kind: output, shape index: {}]
  %s8 = sld [smem:[#allocation0]]
  $region81: #{tpu_custom_call.1} parent=0
    _
  %s10 = ssub.s32 1, %s8
  %s11 = scalar_select 0, %s10, %s8
  $region1: #{tpu_custom_call.1} parent=0
    #allocation2 [shape = 'u8[16384]{0}', space=vmem, size = 0x4000, scoped, tag = 'input window, operand 0']
    #allocation3 [shape = 's32[2]{0}', space=sflag, size = 0x8, scoped, tag = 'scoped memory for tpu_custom_call.1']
    #allocation4 [shape = 's32[2]{0}', space=sflag, size = 0x8, scoped, tag = 'scoped memory for tpu_custom_call.1']
    #allocation5 [shape = 'u8[8192]{0}', space=vmem, size = 0x2000, scoped, tag = 'input window, operand 1']
    #allocation6 [shape = 's32[2]{0}', space=sflag, size = 0x8, scoped, tag = 'scoped memory for tpu_custom_call.1']
    #allocation7 [shape = 'u8[8192]{0}', space=vmem, size = 0x2000, scoped, tag = 'input window, operand 2']
    #allocation8 [shape = 'u8[16384]{0}', space=vmem, size = 0x4000, scoped, tag = 'input window, operand 3']
    #allocation9 [shape = 's32[2]{0}', space=sflag, size = 0x8, scoped, tag = 'scoped memory for tpu_custom_call.1']
    #allocation10 [shape = 'u8[65536]{0}', space=vmem, size = 0x10000, scoped, tag = 'input window, operand 5, single buffered']
    #allocation11 [shape = 'u8[16384]{0}', space=vmem, size = 0x4000, scoped, tag = 'output window, operand 0']
    %12 = vsyncpa [#allocation3], 0
    %s13 = scalar_lea.sflag [#allocation3], 1
    %14 = vsyncpa %s13, 0
    %15 = vsyncpa [#allocation6], 0
    %s16 = scalar_lea.sflag [#allocation6], 1
    %17 = vsyncpa %s16, 0
    %18 = vsyncpa [#allocation9], 0
    %s19 = scalar_lea.sflag [#allocation9], 1
    %20 = vsyncpa %s19, 0
    %21 = vsyncpa [#allocation4], 0
    %s22 = scalar_lea.sflag [#allocation4], 1
    %23 = vsyncpa %s22, 0
    loop: start=0, step=1, limit=4
    $region2: #{tpu_custom_call.1} parent=1 // loop_pre_header
      _
    $region3: #{tpu_custom_call.1} parent=1 // loop_header
      %s25 = sphi 0, %s29
      %p26 = scmp.ge.s32.totalorder %s25, 4
      %s32 = sphi 0, %s44
      %s33 = sphi 0, %s40
      %s34 = sphi 0, %s32
      %s35 = sphi 0, %s33
      %s36 = sphi 0, %s34
      %s37 = sphi 0, %s35
      %s49 = sphi 0, %s51
      %s52 = sphi 0, %s49
      %s53 = sphi 0, %s52
      %s69 = sphi 0, %s53
      %s75 = sphi 0, %s77
      %s78 = sphi 0, %s75
      %s79 = sphi 0, %s78
      %s95 = sphi 0, %s79
      %s101 = sphi 0, %s103
      %s104 = sphi 0, %s101
      %s105 = sphi 0, %s104
      %s121 = sphi 0, %s105
      %s129 = sphi 0, %s131
      %s132 = sphi 0, %s129
      %s133 = sphi 0, %s132
      %s149 = sphi 0, %s133
      %s155 = sphi 0, %s157
      %s158 = sphi 0, %s155
      %s159 = sphi 0, %s158
      %s175 = sphi 0, %s159
      %s179 = sphi 0, %s179
      %s181 = sphi 0, %s179
      %s182 = sphi 0, %s181
      %s196 = sphi 0, %s182
      %s200 = sphi 0, %s200
      %s202 = sphi 0, %s200
      %s203 = sphi 0, %s202
      %s217 = sphi 0, %s203
      %s225 = sphi 0, %s227
      %s228 = sphi 0, %s225
      %s229 = sphi 0, %s228
      %s245 = sphi 0, %s229
    $region4: #{tpu_custom_call.1} parent=1 // loop_header_branch
      %28 = sbr.rel (%p26) target = $region8
    $region5: #{tpu_custom_call.1} parent=1 // loop_body
      %s30 = ssub.s32 %s25, 1
      %s31 = ssub.s32 %s25, 2
      %s38 = sadd.s32 1, %s33
      %p39 = scmp.ge.s32.totalorder %s38, 1
      %s40 = scalar_select %p39, 0, %s38
      %s41 = sadd.s32 1, %s32
      %s42 = scalar_select %p39, %s41, %s32
      %p43 = scmp.ge.s32.totalorder %s42, 2
      %s44 = scalar_select %p43, 0, %s42
      %s45 = ssub.s32 %s32, %s44
      %s46 = ssub.s32 %s33, %s40
      %s47 = sor.u32 %s45, %s46
      %p48 = scmp.eq.s32.totalorder %s47, 0
      %s50 = sadd.s32 %s49, 1
      %s51 = scalar_select %p48, %s49, %s50
      %p54 = pneg %p48
      %p55 = scmp.eq.s32.totalorder %s25, 1
      %p56 = por %p54, %p55
      %p57 = scmp.ne.s32.totalorder %s49, %s52
      %p58 = scmp.eq.s32.totalorder %s25, 0
      %p59 = por %p57, %p58
      %p60 = scmp.ne.s32.totalorder %s49, %s52
      %p61 = scmp.eq.s32.totalorder %s30, 1
      %p62 = por %p60, %p61
      %p63 = scmp.ne.s32.totalorder %s52, %s53
      %p64 = scmp.eq.s32.totalorder %s30, 0
      %p65 = por %p63, %p64
      %p66 = scmp.ne.s32.totalorder %s52, %s53
      %p67 = scmp.eq.s32.totalorder %s31, 1
      %p68 = por %p66, %p67
      %p70 = scmp.ne.s32.totalorder %s53, %s69
      %p71 = scmp.eq.s32.totalorder %s31, 0
      %p72 = por %p70, %p71
      %s73 = ssub.s32 %s32, %s44
      %p74 = scmp.eq.s32.totalorder %s73, 0
      %s76 = sadd.s32 %s75, 1
      %s77 = scalar_select %p74, %s75, %s76
      %p80 = pneg %p74
      %p81 = scmp.eq.s32.totalorder %s25, 1
      %p82 = por %p80, %p81
      %p83 = scmp.ne.s32.totalorder %s75, %s78
      %p84 = scmp.eq.s32.totalorder %s25, 0
      %p85 = por %p83, %p84
      %p86 = scmp.ne.s32.totalorder %s75, %s78
      %p87 = scmp.eq.s32.totalorder %s30, 1
      %p88 = por %p86, %p87
      %p89 = scmp.ne.s32.totalorder %s78, %s79
      %p90 = scmp.eq.s32.totalorder %s30, 0
      %p91 = por %p89, %p90
      %p92 = scmp.ne.s32.totalorder %s78, %s79
      %p93 = scmp.eq.s32.totalorder %s31, 1
      %p94 = por %p92, %p93
      %p96 = scmp.ne.s32.totalorder %s79, %s95
      %p97 = scmp.eq.s32.totalorder %s31, 0
      %p98 = por %p96, %p97
      %s99 = ssub.s32 %s32, %s44
      %p100 = scmp.eq.s32.totalorder %s99, 0
      %s102 = sadd.s32 %s101, 1
      %s103 = scalar_select %p100, %s101, %s102
      %p106 = pneg %p100
      %p107 = scmp.eq.s32.totalorder %s25, 1
      %p108 = por %p106, %p107
      %p109 = scmp.ne.s32.totalorder %s101, %s104
      %p110 = scmp.eq.s32.totalorder %s25, 0
      %p111 = por %p109, %p110
      %p112 = scmp.ne.s32.totalorder %s101, %s104
      %p113 = scmp.eq.s32.totalorder %s30, 1
      %p114 = por %p112, %p113
      %p115 = scmp.ne.s32.totalorder %s104, %s105
      %p116 = scmp.eq.s32.totalorder %s30, 0
      %p117 = por %p115, %p116
      %p118 = scmp.ne.s32.totalorder %s104, %s105
      %p119 = scmp.eq.s32.totalorder %s31, 1
      %p120 = por %p118, %p119
      %p122 = scmp.ne.s32.totalorder %s105, %s121
      %p123 = scmp.eq.s32.totalorder %s31, 0
      %p124 = por %p122, %p123
      %s125 = ssub.s32 %s32, %s44
      %s126 = ssub.s32 %s33, %s40
      %s127 = sor.u32 %s125, %s126
      %p128 = scmp.eq.s32.totalorder %s127, 0
      %s130 = sadd.s32 %s129, 1
      %s131 = scalar_select %p128, %s129, %s130
      %p134 = pneg %p128
      %p135 = scmp.eq.s32.totalorder %s25, 1
      %p136 = por %p134, %p135
      %p137 = scmp.ne.s32.totalorder %s129, %s132
      %p138 = scmp.eq.s32.totalorder %s25, 0
      %p139 = por %p137, %p138
      %p140 = scmp.ne.s32.totalorder %s129, %s132
      %p141 = scmp.eq.s32.totalorder %s30, 1
      %p142 = por %p140, %p141
      %p143 = scmp.ne.s32.totalorder %s132, %s133
      %p144 = scmp.eq.s32.totalorder %s30, 0
      %p145 = por %p143, %p144
      %p146 = scmp.ne.s32.totalorder %s132, %s133
      %p147 = scmp.eq.s32.totalorder %s31, 1
      %p148 = por %p146, %p147
      %p150 = scmp.ne.s32.totalorder %s133, %s149
      %p151 = scmp.eq.s32.totalorder %s31, 0
      %p152 = por %p150, %p151
      %s153 = ssub.s32 %s32, %s44
      %p154 = scmp.eq.s32.totalorder %s153, 0
      %s156 = sadd.s32 %s155, 1
      %s157 = scalar_select %p154, %s155, %s156
      %p160 = pneg %p154
      %p161 = scmp.eq.s32.totalorder %s25, 1
      %p162 = por %p160, %p161
      %p163 = scmp.ne.s32.totalorder %s155, %s158
      %p164 = scmp.eq.s32.totalorder %s25, 0
      %p165 = por %p163, %p164
      %p166 = scmp.ne.s32.totalorder %s155, %s158
      %p167 = scmp.eq.s32.totalorder %s30, 1
      %p168 = por %p166, %p167
      %p169 = scmp.ne.s32.totalorder %s158, %s159
      %p170 = scmp.eq.s32.totalorder %s30, 0
      %p171 = por %p169, %p170
      %p172 = scmp.ne.s32.totalorder %s158, %s159
      %p173 = scmp.eq.s32.totalorder %s31, 1
      %p174 = por %p172, %p173
      %p176 = scmp.ne.s32.totalorder %s159, %s175
      %p177 = scmp.eq.s32.totalorder %s31, 0
      %p178 = por %p176, %p177
      %s180 = sadd.s32 %s179, 1
      %p183 = scmp.eq.s32.totalorder %s25, 1
      %p184 = scmp.ne.s32.totalorder %s179, %s181
      %p185 = scmp.eq.s32.totalorder %s25, 0
      %p186 = por %p184, %p185
      %p187 = scmp.ne.s32.totalorder %s179, %s181
      %p188 = scmp.eq.s32.totalorder %s30, 1
      %p189 = por %p187, %p188
      %p190 = scmp.ne.s32.totalorder %s181, %s182
      %p191 = scmp.eq.s32.totalorder %s30, 0
      %p192 = por %p190, %p191
      %p193 = scmp.ne.s32.totalorder %s181, %s182
      %p194 = scmp.eq.s32.totalorder %s31, 1
      %p195 = por %p193, %p194
      %p197 = scmp.ne.s32.totalorder %s182, %s196
      %p198 = scmp.eq.s32.totalorder %s31, 0
      %p199 = por %p197, %p198
      %s201 = sadd.s32 %s200, 1
      %p204 = scmp.eq.s32.totalorder %s25, 1
      %p205 = scmp.ne.s32.totalorder %s200, %s202
      %p206 = scmp.eq.s32.totalorder %s25, 0
      %p207 = por %p205, %p206
      %p208 = scmp.ne.s32.totalorder %s200, %s202
      %p209 = scmp.eq.s32.totalorder %s30, 1
      %p210 = por %p208, %p209
      %p211 = scmp.ne.s32.totalorder %s202, %s203
      %p212 = scmp.eq.s32.totalorder %s30, 0
      %p213 = por %p211, %p212
      %p214 = scmp.ne.s32.totalorder %s202, %s203
      %p215 = scmp.eq.s32.totalorder %s31, 1
      %p216 = por %p214, %p215
      %p218 = scmp.ne.s32.totalorder %s203, %s217
      %p219 = scmp.eq.s32.totalorder %s31, 0
      %p220 = por %p218, %p219
      %s221 = ssub.s32 %s32, %s44
      %s222 = ssub.s32 %s33, %s40
      %s223 = sor.u32 %s221, %s222
      %p224 = scmp.eq.s32.totalorder %s223, 0
      %s226 = sadd.s32 %s225, 1
      %s227 = scalar_select %p224, %s225, %s226
      %p230 = pneg %p224
      %p231 = scmp.eq.s32.totalorder %s25, 1
      %p232 = por %p230, %p231
      %p233 = scmp.ne.s32.totalorder %s225, %s228
      %p234 = scmp.eq.s32.totalorder %s25, 0
      %p235 = por %p233, %p234
      %p236 = scmp.ne.s32.totalorder %s225, %s228
      %p237 = scmp.eq.s32.totalorder %s30, 1
      %p238 = por %p236, %p237
      %p239 = scmp.ne.s32.totalorder %s228, %s229
      %p240 = scmp.eq.s32.totalorder %s30, 0
      %p241 = por %p239, %p240
      %p242 = scmp.ne.s32.totalorder %s228, %s229
      %p243 = scmp.eq.s32.totalorder %s31, 1
      %p244 = por %p242, %p243
      %p246 = scmp.ne.s32.totalorder %s229, %s245
      %p247 = scmp.eq.s32.totalorder %s31, 0
      %p248 = por %p246, %p247
      %p249 = scmp.le.s32.totalorder 1, %s25
      %p250 = scmp.lt.s32.totalorder %s25, 3
      %p251 = pnand %p249, %p250
      %p252 = pneg %p251
      // Predicated region
      $region9: #{tpu_custom_call.1} parent=5 // pred_check
        _
      $region10: #{tpu_custom_call.1} parent=5 // pred_check_branch
        %254 = sbr.rel (%p251) target = $region12
      $region11: #{tpu_custom_call.1} parent=5 // pred_region
        %s255 = ssub.s32 %s25, 1
        // Predicated region
        $region13: #{tpu_custom_call.1} parent=11 // pred_check
          %p256 = pneg %p192
        $region14: #{tpu_custom_call.1} parent=11 // pred_check_branch
          %258 = sbr.rel (%p256) target = $region16
        $region15: #{tpu_custom_call.1} parent=11 // pred_region
          %s260 = ssub.s32 2048, 2048
          %261 = vsyncadd [#allocation9], %s260
          %s262 = sshll.u32 [#allocation10], 4
          %s263 = int_to_ptr.vmem [resolvable:$true] %s262
          %268 = dma.hbm_to_vmem [thread:$0]  %s5, 2048, %s263, [#allocation9], 128, 128, 8
        $region16: #{tpu_custom_call.1} parent=11 // pred_fallthru
          _
        // Predicated region
        $region17: #{tpu_custom_call.1} parent=11 // pred_check
          %p269 = pneg %p213
        $region18: #{tpu_custom_call.1} parent=11 // pred_check_branch
          %271 = sbr.rel (%p269) target = $region20
        $region19: #{tpu_custom_call.1} parent=11 // pred_region
          _
        $region20: #{tpu_custom_call.1} parent=11 // pred_fallthru
          _
      $region12: #{tpu_custom_call.1} parent=5 // pred_fallthru
        _
      %p272 = scmp.lt.s32.totalorder %s25, 2
      // Predicated region
      $region21: #{tpu_custom_call.1} parent=5 // pred_check
        %p273 = pneg %p272
      $region22: #{tpu_custom_call.1} parent=5 // pred_check_branch
        %275 = sbr.rel (%p273) target = $region24
      $region23: #{tpu_custom_call.1} parent=5 // pred_region
        // Predicated region
        $region25: #{tpu_custom_call.1} parent=23 // pred_check
          %p276 = pneg %p59
        $region26: #{tpu_custom_call.1} parent=23 // pred_check_branch
          %278 = sbr.rel (%p276) target = $region28
        $region27: #{tpu_custom_call.1} parent=23 // pred_region
          %s279 = sand.u32 %s49, 1
          %s280 = scalar_lea.sflag [#allocation3], %s279
          %s281 = sand.u32 %s49, 1
          %s282 = smul.addr %s281, 16
          %s283 = scalar_lea.vmem [#allocation2], %s282
          %s284 = smul.u32 2, %s33
          %s286 = ssub.s32 256, 256
          %287 = vsyncadd %s280, %s286
          %s288 = smul.addr %s32, 2
          %s289 = sadd.s32 %s284, %s288
          %s290 = smul.addr %s289, 128
          %s291 = scalar_lea.hbm %s0, %s290
          %s292 = sshll.u32 %s283, 4
          %s293 = int_to_ptr.vmem [resolvable:$true] %s292
          %298 = dma.hbm_to_vmem [thread:$0]  %s291, 256, %s293, %s280, 128, 128, 8
        $region28: #{tpu_custom_call.1} parent=23 // pred_fallthru
          _
        // Predicated region
        $region29: #{tpu_custom_call.1} parent=23 // pred_check
          %p299 = pneg %p85
        $region30: #{tpu_custom_call.1} parent=23 // pred_check_branch
          %301 = sbr.rel (%p299) target = $region32
        $region31: #{tpu_custom_call.1} parent=23 // pred_region
          %s302 = sand.u32 %s25, 1
          %s303 = scalar_lea.sflag [#allocation6], %s302
          %s304 = sand.u32 %s75, 1
          %s305 = smul.addr %s304, 8
          %s306 = scalar_lea.vmem [#allocation5], %s305
          %s308 = ssub.s32 128, 128
          %309 = vsyncadd %s303, %s308
          %s310 = smul.addr %s32, 128
          %s311 = scalar_lea.hbm %s1, %s310
          %s313 = sshll.u32 %s306, 4
          %s314 = int_to_ptr.vmem [resolvable:$true] %s313
          %316 = dma.hbm_to_vmem [thread:$0]  %s311, 128, %s314, %s303
        $region32: #{tpu_custom_call.1} parent=23 // pred_fallthru
          _
        // Predicated region
        $region33: #{tpu_custom_call.1} parent=23 // pred_check
          %p317 = pneg %p111
        $region34: #{tpu_custom_call.1} parent=23 // pred_check_branch
          %319 = sbr.rel (%p317) target = $region36
        $region35: #{tpu_custom_call.1} parent=23 // pred_region
          %s320 = sand.u32 %s25, 1
          %s321 = scalar_lea.sflag [#allocation6], %s320
          %s322 = sand.u32 %s101, 1
          %s323 = smul.addr %s322, 8
          %s324 = scalar_lea.vmem [#allocation7], %s323
          %s326 = ssub.s32 128, 128
          %327 = vsyncadd %s321, %s326
          %s328 = smul.addr %s32, 128
          %s329 = scalar_lea.hbm %s2, %s328
          %s331 = sshll.u32 %s324, 4
          %s332 = int_to_ptr.vmem [resolvable:$true] %s331
          %334 = dma.hbm_to_vmem [thread:$0]  %s329, 128, %s332, %s321
        $region36: #{tpu_custom_call.1} parent=23 // pred_fallthru
          _
        // Predicated region
        $region37: #{tpu_custom_call.1} parent=23 // pred_check
          %p335 = pneg %p139
        $region38: #{tpu_custom_call.1} parent=23 // pred_check_branch
          %337 = sbr.rel (%p335) target = $region40
        $region39: #{tpu_custom_call.1} parent=23 // pred_region
          %s338 = sand.u32 %s25, 1
          %s339 = scalar_lea.sflag [#allocation9], %s338
          %s340 = sand.u32 %s129, 1
          %s341 = smul.addr %s340, 16
          %s342 = scalar_lea.vmem [#allocation8], %s341
          %s343 = smul.u32 2, %s33
          %s345 = ssub.s32 256, 256
          %346 = vsyncadd %s339, %s345
          %s347 = smul.addr %s32, 2
          %s348 = sadd.s32 %s343, %s347
          %s349 = smul.addr %s348, 128
          %s350 = scalar_lea.hbm %s3, %s349
          %s351 = sshll.u32 %s342, 4
          %s352 = int_to_ptr.vmem [resolvable:$true] %s351
          %357 = dma.hbm_to_vmem [thread:$0]  %s350, 256, %s352, %s339, 128, 128, 8
        $region40: #{tpu_custom_call.1} parent=23 // pred_fallthru
          _
        // Predicated region
        $region41: #{tpu_custom_call.1} parent=23 // pred_check
          %p358 = pneg %p165
        $region42: #{tpu_custom_call.1} parent=23 // pred_check_branch
          %360 = sbr.rel (%p358) target = $region44
        $region43: #{tpu_custom_call.1} parent=23 // pred_region
          %p361 = scmp.lt.s32.totalorder %s32, 1
          %s362 = scalar_select %p361, %s32, 1
          %s363 = scalar_lea.vmem %s4, %s362
        $region44: #{tpu_custom_call.1} parent=23 // pred_fallthru
          _
      $region24: #{tpu_custom_call.1} parent=5 // pred_fallthru
        _
      %p364 = scmp.le.s32.totalorder 1, %s25
      %p365 = scmp.lt.s32.totalorder %s25, 3
      %p366 = pnand %p364, %p365
      %p367 = pneg %p366
      // Predicated region
      $region45: #{tpu_custom_call.1} parent=5 // pred_check
        _
      $region46: #{tpu_custom_call.1} parent=5 // pred_check_branch
        %369 = sbr.rel (%p366) target = $region48
      $region47: #{tpu_custom_call.1} parent=5 // pred_region
        %s370 = ssub.s32 %s25, 1
        %s371 = sand.u32 %s52, 1
        %s372 = scalar_lea.sflag [#allocation3], %s371
        %s373 = sand.u32 %s52, 1
        %s374 = smul.addr %s373, 16
        %s375 = scalar_lea.vmem [#allocation2], %s374
        // Predicated region
        $region49: #{tpu_custom_call.1} parent=47 // pred_check
          %p376 = pneg %p65
        $region50: #{tpu_custom_call.1} parent=47 // pred_check_branch
          %378 = sbr.rel (%p376) target = $region52
        $region51: #{tpu_custom_call.1} parent=47 // pred_region
          %379 = dma.done %s372, 256
        $region52: #{tpu_custom_call.1} parent=47 // pred_fallthru
          _
        %s380 = sand.u32 %s30, 1
        %s381 = scalar_lea.sflag [#allocation6], %s380
        %s382 = sand.u32 %s78, 1
        %s383 = smul.addr %s382, 8
        %s384 = scalar_lea.vmem [#allocation5], %s383
        // Predicated region
        $region53: #{tpu_custom_call.1} parent=47 // pred_check
          %p385 = pneg %p91
        $region54: #{tpu_custom_call.1} parent=47 // pred_check_branch
          %387 = sbr.rel (%p385) target = $region56
        $region55: #{tpu_custom_call.1} parent=47 // pred_region
          %388 = dma.done %s381, 128
        $region56: #{tpu_custom_call.1} parent=47 // pred_fallthru
          _
        %s389 = sand.u32 %s30, 1
        %s390 = scalar_lea.sflag [#allocation6], %s389
        %s391 = sand.u32 %s104, 1
        %s392 = smul.addr %s391, 8
        %s393 = scalar_lea.vmem [#allocation7], %s392
        // Predicated region
        $region57: #{tpu_custom_call.1} parent=47 // pred_check
          %p394 = pneg %p117
        $region58: #{tpu_custom_call.1} parent=47 // pred_check_branch
          %396 = sbr.rel (%p394) target = $region60
        $region59: #{tpu_custom_call.1} parent=47 // pred_region
          %397 = dma.done %s390, 128
        $region60: #{tpu_custom_call.1} parent=47 // pred_fallthru
          _
        %s398 = sand.u32 %s30, 1
        %s399 = scalar_lea.sflag [#allocation9], %s398
        %s400 = sand.u32 %s132, 1
        %s401 = smul.addr %s400, 16
        %s402 = scalar_lea.vmem [#allocation8], %s401
        // Predicated region
        $region61: #{tpu_custom_call.1} parent=47 // pred_check
          %p403 = pneg %p145
        $region62: #{tpu_custom_call.1} parent=47 // pred_check_branch
          %405 = sbr.rel (%p403) target = $region64
        $region63: #{tpu_custom_call.1} parent=47 // pred_region
          %406 = dma.done %s399, 256
        $region64: #{tpu_custom_call.1} parent=47 // pred_fallthru
          _
        // Predicated region
        $region65: #{tpu_custom_call.1} parent=47 // pred_check
          %p407 = pneg %p192
        $region66: #{tpu_custom_call.1} parent=47 // pred_check_branch
          %409 = sbr.rel (%p407) target = $region68
        $region67: #{tpu_custom_call.1} parent=47 // pred_region
          %410 = dma.done [#allocation9], 2048
        $region68: #{tpu_custom_call.1} parent=47 // pred_fallthru
          _
        %s411 = sand.u32 %s52, 1
        %s412 = scalar_lea.sflag [#allocation3], %s411
        %s413 = sand.u32 %s52, 1
        %s414 = smul.addr %s413, 16
        %s415 = scalar_lea.vmem [#allocation2], %s414
        %p416 = pneg %p65
        %p417 = pneg %p62
        %s418 = sand.u32 %s30, 1
        %s419 = scalar_lea.sflag [#allocation6], %s418
        %s420 = sand.u32 %s78, 1
        %s421 = smul.addr %s420, 8
        %s422 = scalar_lea.vmem [#allocation5], %s421
        %p423 = pneg %p91
        %p424 = pneg %p88
        %s425 = sand.u32 %s30, 1
        %s426 = scalar_lea.sflag [#allocation6], %s425
        %s427 = sand.u32 %s104, 1
        %s428 = smul.addr %s427, 8
        %s429 = scalar_lea.vmem [#allocation7], %s428
        %p430 = pneg %p117
        %p431 = pneg %p114
        %s432 = sand.u32 %s30, 1
        %s433 = scalar_lea.sflag [#allocation9], %s432
        %s434 = sand.u32 %s132, 1
        %s435 = smul.addr %s434, 16
        %s436 = scalar_lea.vmem [#allocation8], %s435
        %p437 = pneg %p145
        %p438 = pneg %p142
        %p439 = scmp.lt.s32.totalorder %s34, 1
        %s440 = scalar_select %p439, %s34, 1
        %s441 = scalar_lea.vmem %s4, %s440
        %p442 = pneg %p171
        %p443 = pneg %p168
        %p444 = pneg %p192
        %p445 = pneg %p189
        %p446 = pneg %p213
        %p447 = pneg %p210
        %p448 = pneg %p241
        %p449 = pneg %p238
        %s450 = sand.u32 %s228, 1
        %s451 = scalar_lea.sflag [#allocation4], %s450
        %s452 = sand.u32 %s228, 1
        %s453 = smul.addr %s452, 16
        %s454 = scalar_lea.vmem [#allocation11], %s453
        %s455 = smul.u32 2, %s35
        %s456 = smul.u32 2, %s35
        %p457 = scmp.lt.s32.totalorder %s34, 1
        %s458 = scalar_select %p457, %s34, 1
        %s459 = scalar_lea.vmem %s4, %s458
        %s460 = smul.u32 2, %s35
        %v461 = vld [vmem:[%s375] sm:$0xff]
        %v462 = vld [vmem:[%s375 + $0x8] sm:$0xff]
        %v463 = vld [vmem:[%s384] sm:$0xff]
        %v464 = vld [vmem:[%s393] sm:$0xff]
        %v465 = vld [vmem:[%s459] sm:$0x1]
        %v466 = vld [vmem:[%s6] sm:$0xf]
        %v467 = vld [vmem:[#allocation10] sm:$0xff]
        %v468 = vld [vmem:[#allocation10 + $0x8] sm:$0xff]
        %v469 = vld [vmem:[#allocation10 + $0x10] sm:$0xff]
        %v470 = vld [vmem:[#allocation10 + $0x18] sm:$0xff]
        %v471 = vlaneseq
        %v472 = vshrl.u32 %v471, 7
        %v473 = vsub.s32 0, %v472
        %v474 = vrot.slane %v466, %v473
        %vm475 = vcmask 261120
        %v477 = vsel %vm475, %v461, 0
        %v480 = vsel %vm475, %v462, 0
        %482 = vmatprep.subr.mxu0 0.0
        %483 = vmatpush1.msra.mxu0 0.0
        %484 = vmatprep.subr.mxu0 0.0
        %485 = vmatpush1.msra.mxu0 0.0
        %486 = vmatprep.subr.mxu0 0.0
        %487 = vmatpush1.msra.mxu0 0.0
        %488 = vmatprep.subr.mxu0 0.0
        %489 = vmatpush1.msra.mxu0 0.0
        %490 = vmatprep.subr.mxu0 0.0
        %491 = vmatpush1.msra.mxu0 0.0
        %492 = vmatprep.subr.mxu0 0.0
        %493 = vmatpush1.msra.mxu0 0.0
        %494 = vmatprep.subr.mxu0 0.0
        %495 = vmatpush1.msra.mxu0 0.0
        %496 = vmatprep.subr.mxu0 0.0
        %497 = vmatpush1.msra.mxu0 0.0
        %498 = vmatprep.subr.mxu0 0.0
        %499 = vmatpush1.msra.mxu0 0.0
        %500 = vmatprep.subr.mxu0 0.0
        %501 = vmatpush1.msra.mxu0 0.0
        %502 = vmatprep.subr.mxu0 0.0
        %503 = vmatpush1.msra.mxu0 0.0
        %504 = vmatprep.subr.mxu0 0.0
        %505 = vmatpush1.msra.mxu0 0.0
        %506 = vmatprep.subr.mxu0 0.0
        %507 = vmatpush1.msra.mxu0 %v470
        %508 = vmatprep.subr.mxu0 0.0
        %509 = vmatpush1.msra.mxu0 %v469
        %510 = vmatprep.subr.mxu0 0.0
        %511 = vmatpush1.msra.mxu0 %v468
        %512 = vmatprep.subr.mxu0 0.0
        %513 = vmatpush1.msra.mxu0 %v467
        %514 = vmatprep.subr.mxu0 0.0
        %515 = vmatpush2.msra.mxu0 0.0
        %516 = vmatprep.subr.mxu0 0.0
        %517 = vmatpush2.msra.mxu0 0.0
        %518 = vmatprep.subr.mxu0 0.0
        %519 = vmatpush2.msra.mxu0 0.0
        %520 = vmatprep.subr.mxu0 0.0
        %521 = vmatpush2.msra.mxu0 0.0
        %522 = vmatprep.subr.mxu0 0.0
        %523 = vmatpush2.msra.mxu0 0.0
        %524 = vmatprep.subr.mxu0 0.0
        %525 = vmatpush2.msra.mxu0 0.0
        %526 = vmatprep.subr.mxu0 0.0
        %527 = vmatpush2.msra.mxu0 0.0
        %528 = vmatprep.subr.mxu0 0.0
        %529 = vmatpush2.msra.mxu0 0.0
        %530 = vmatprep.subr.mxu0 0.0
        %531 = vmatpush2.msra.mxu0 0.0
        %532 = vmatprep.subr.mxu0 0.0
        %533 = vmatpush2.msra.mxu0 0.0
        %534 = vmatprep.subr.mxu0 0.0
        %535 = vmatpush2.msra.mxu0 0.0
        %536 = vmatprep.subr.mxu0 0.0
        %537 = vmatpush2.msra.mxu0 0.0
        %538 = vmatprep.subr.mxu0 0.0
        %539 = vmatpush2.msra.mxu0 0.0
        %540 = vmatprep.subr.mxu0 0.0
        %541 = vmatpush2.msra.mxu0 0.0
        %542 = vmatprep.subr.mxu0 0.0
        %543 = vmatpush2.msra.mxu0 0.0
        %544 = vmatprep.subr.mxu0 0.0
        %545 = vmatpush2.msra.mxu0 0.0
        %546 = vmatprep.mubr.f32.mxu0 0.0
        %547 = vmatmul.mubr.f32.gmra.mxu0 %v477
        %v548 = vpop.f32.mrf.mxu0
        %v549 = vadd.f32 %v474, %v548
        %v550 = vpop.f32.mrf.mxu0
        %551 = vmatprep.mubr.f32.mxu0 0.0
        %552 = vmatmul.mubr.f32.gmra.mxu0 %v480
        %v553 = vpop.f32.mrf.mxu0
        %v554 = vadd.f32 %v474, %v553
        %v555 = vpop.f32.mrf.mxu0
        %556 = vdwg.mxu0
        %s557 = scalar_lea.vmem [#allocation10], 32
        %v558 = vld [vmem:[%s557] sm:$0xff]
        %v559 = vld [vmem:[%s557 + $0x8] sm:$0xff]
        %v560 = vld [vmem:[%s557 + $0x10] sm:$0xff]
        %v561 = vld [vmem:[%s557 + $0x18] sm:$0xff]
        %v562 = vlaneseq
        %v563 = vshrl.u32 %v562, 7
        %v564 = vsub.s32 1, %v563
        %v565 = vrot.slane %v466, %v564
        %v567 = vsel %vm475, %v463, 0
        %569 = vmatprep.subr.mxu0 0.0
        %570 = vmatpush1.msra.mxu0 0.0
        %571 = vmatprep.subr.mxu0 0.0
        %572 = vmatpush1.msra.mxu0 0.0
        %573 = vmatprep.subr.mxu0 0.0
        %574 = vmatpush1.msra.mxu0 0.0
        %575 = vmatprep.subr.mxu0 0.0
        %576 = vmatpush1.msra.mxu0 0.0
        %577 = vmatprep.subr.mxu0 0.0
        %578 = vmatpush1.msra.mxu0 0.0
        %579 = vmatprep.subr.mxu0 0.0
        %580 = vmatpush1.msra.mxu0 0.0
        %581 = vmatprep.subr.mxu0 0.0
        %582 = vmatpush1.msra.mxu0 0.0
        %583 = vmatprep.subr.mxu0 0.0
        %584 = vmatpush1.msra.mxu0 0.0
        %585 = vmatprep.subr.mxu0 0.0
        %586 = vmatpush1.msra.mxu0 0.0
        %587 = vmatprep.subr.mxu0 0.0
        %588 = vmatpush1.msra.mxu0 0.0
        %589 = vmatprep.subr.mxu0 0.0
        %590 = vmatpush1.msra.mxu0 0.0
        %591 = vmatprep.subr.mxu0 0.0
        %592 = vmatpush1.msra.mxu0 0.0
        %593 = vmatprep.subr.mxu0 0.0
        %594 = vmatpush1.msra.mxu0 %v561
        %595 = vmatprep.subr.mxu0 0.0
        %596 = vmatpush1.msra.mxu0 %v560
        %597 = vmatprep.subr.mxu0 0.0
        %598 = vmatpush1.msra.mxu0 %v559
        %599 = vmatprep.subr.mxu0 0.0
        %600 = vmatpush1.msra.mxu0 %v558
        %601 = vmatprep.subr.mxu0 0.0
        %602 = vmatpush2.msra.mxu0 0.0
        %603 = vmatprep.subr.mxu0 0.0
        %604 = vmatpush2.msra.mxu0 0.0
        %605 = vmatprep.subr.mxu0 0.0
        %606 = vmatpush2.msra.mxu0 0.0
        %607 = vmatprep.subr.mxu0 0.0
        %608 = vmatpush2.msra.mxu0 0.0
        %609 = vmatprep.subr.mxu0 0.0
        %610 = vmatpush2.msra.mxu0 0.0
        %611 = vmatprep.subr.mxu0 0.0
        %612 = vmatpush2.msra.mxu0 0.0
        %613 = vmatprep.subr.mxu0 0.0
        %614 = vmatpush2.msra.mxu0 0.0
        %615 = vmatprep.subr.mxu0 0.0
        %616 = vmatpush2.msra.mxu0 0.0
        %617 = vmatprep.subr.mxu0 0.0
        %618 = vmatpush2.msra.mxu0 0.0
        %619 = vmatprep.subr.mxu0 0.0
        %620 = vmatpush2.msra.mxu0 0.0
        %621 = vmatprep.subr.mxu0 0.0
        %622 = vmatpush2.msra.mxu0 0.0
        %623 = vmatprep.subr.mxu0 0.0
        %624 = vmatpush2.msra.mxu0 0.0
        %625 = vmatprep.subr.mxu0 0.0
        %626 = vmatpush2.msra.mxu0 0.0
        %627 = vmatprep.subr.mxu0 0.0
        %628 = vmatpush2.msra.mxu0 0.0
        %629 = vmatprep.subr.mxu0 0.0
        %630 = vmatpush2.msra.mxu0 0.0
        %631 = vmatprep.subr.mxu0 0.0
        %632 = vmatpush2.msra.mxu0 0.0
        %633 = vmatprep.mubr.f32.mxu0 0.0
        %634 = vmatmul.mubr.f32.gmra.mxu0 %v567
        %v635 = vpop.f32.mrf.mxu0
        %v636 = vadd.f32 %v565, %v635
        %v637 = vpop.f32.mrf.mxu0
        %638 = vdwg.mxu0
        %s639 = scalar_lea.vmem [#allocation10], 64
        %v640 = vld [vmem:[%s639] sm:$0xff]
        %v641 = vld [vmem:[%s639 + $0x8] sm:$0xff]
        %v642 = vld [vmem:[%s639 + $0x10] sm:$0xff]
        %v643 = vld [vmem:[%s639 + $0x18] sm:$0xff]
        %v644 = vlaneseq
        %v645 = vshrl.u32 %v644, 7
        %v646 = vsub.s32 2, %v645
        %v647 = vrot.slane %v466, %v646
        %v649 = vsel %vm475, %v464, 0
        %651 = vmatprep.subr.mxu0 0.0
        %652 = vmatpush1.msra.mxu0 0.0
        %653 = vmatprep.subr.mxu0 0.0
        %654 = vmatpush1.msra.mxu0 0.0
        %655 = vmatprep.subr.mxu0 0.0
        %656 = vmatpush1.msra.mxu0 0.0
        %657 = vmatprep.subr.mxu0 0.0
        %658 = vmatpush1.msra.mxu0 0.0
        %659 = vmatprep.subr.mxu0 0.0
        %660 = vmatpush1.msra.mxu0 0.0
        %661 = vmatprep.subr.mxu0 0.0
        %662 = vmatpush1.msra.mxu0 0.0
        %663 = vmatprep.subr.mxu0 0.0
        %664 = vmatpush1.msra.mxu0 0.0
        %665 = vmatprep.subr.mxu0 0.0
        %666 = vmatpush1.msra.mxu0 0.0
        %667 = vmatprep.subr.mxu0 0.0
        %668 = vmatpush1.msra.mxu0 0.0
        %669 = vmatprep.subr.mxu0 0.0
        %670 = vmatpush1.msra.mxu0 0.0
        %671 = vmatprep.subr.mxu0 0.0
        %672 = vmatpush1.msra.mxu0 0.0
        %673 = vmatprep.subr.mxu0 0.0
        %674 = vmatpush1.msra.mxu0 0.0
        %675 = vmatprep.subr.mxu0 0.0
        %676 = vmatpush1.msra.mxu0 %v643
        %677 = vmatprep.subr.mxu0 0.0
        %678 = vmatpush1.msra.mxu0 %v642
        %679 = vmatprep.subr.mxu0 0.0
        %680 = vmatpush1.msra.mxu0 %v641
        %681 = vmatprep.subr.mxu0 0.0
        %682 = vmatpush1.msra.mxu0 %v640
        %683 = vmatprep.subr.mxu0 0.0
        %684 = vmatpush2.msra.mxu0 0.0
        %685 = vmatprep.subr.mxu0 0.0
        %686 = vmatpush2.msra.mxu0 0.0
        %687 = vmatprep.subr.mxu0 0.0
        %688 = vmatpush2.msra.mxu0 0.0
        %689 = vmatprep.subr.mxu0 0.0
        %690 = vmatpush2.msra.mxu0 0.0
        %691 = vmatprep.subr.mxu0 0.0
        %692 = vmatpush2.msra.mxu0 0.0
        %693 = vmatprep.subr.mxu0 0.0
        %694 = vmatpush2.msra.mxu0 0.0
        %695 = vmatprep.subr.mxu0 0.0
        %696 = vmatpush2.msra.mxu0 0.0
        %697 = vmatprep.subr.mxu0 0.0
        %698 = vmatpush2.msra.mxu0 0.0
        %699 = vmatprep.subr.mxu0 0.0
        %700 = vmatpush2.msra.mxu0 0.0
        %701 = vmatprep.subr.mxu0 0.0
        %702 = vmatpush2.msra.mxu0 0.0
        %703 = vmatprep.subr.mxu0 0.0
        %704 = vmatpush2.msra.mxu0 0.0
        %705 = vmatprep.subr.mxu0 0.0
        %706 = vmatpush2.msra.mxu0 0.0
        %707 = vmatprep.subr.mxu0 0.0
        %708 = vmatpush2.msra.mxu0 0.0
        %709 = vmatprep.subr.mxu0 0.0
        %710 = vmatpush2.msra.mxu0 0.0
        %711 = vmatprep.subr.mxu0 0.0
        %712 = vmatpush2.msra.mxu0 0.0
        %713 = vmatprep.subr.mxu0 0.0
        %714 = vmatpush2.msra.mxu0 0.0
        %715 = vmatprep.mubr.f32.mxu0 0.0
        %716 = vmatmul.mubr.f32.gmra.mxu0 %v649
        %v717 = vpop.f32.mrf.mxu0
        %v718 = vadd.f32 %v647, %v717
        %v719 = vpop.f32.mrf.mxu0
        %720 = vdwg.mxu0
        %v722 = vlaneseq
        %v723 = vshrl.u32 %v722, 7
        %v724 = vsub.s32 0, %v723
        %v725 = vrot.slane %v465, %v724
        %vm727 = vcmask 64512
        %v729 = vsel %vm727, %v549, 0
        %v732 = vsel %vm727, %v554, 0
        %v735 = vsel %vm727, %v636, 0
        %737 = vmatprep.subr.mxu0 0.0
        %738 = vmatpush1.xpose.msra.mxu0 0.0
        %739 = vmatprep.subr.mxu0 0.0
        %740 = vmatpush1.xpose.msra.mxu0 0.0
        %741 = vmatprep.subr.mxu0 0.0
        %742 = vmatpush1.xpose.msra.mxu0 0.0
        %743 = vmatprep.subr.mxu0 0.0
        %744 = vmatpush1.xpose.msra.mxu0 0.0
        %745 = vmatprep.subr.mxu0 0.0
        %746 = vmatpush1.xpose.msra.mxu0 0.0
        %747 = vmatprep.subr.mxu0 0.0
        %748 = vmatpush1.xpose.msra.mxu0 0.0
        %749 = vmatprep.subr.mxu0 0.0
        %750 = vmatpush1.xpose.msra.mxu0 0.0
        %751 = vmatprep.subr.mxu0 0.0
        %752 = vmatpush1.xpose.msra.mxu0 0.0
        %753 = vmatprep.subr.mxu0 0.0
        %754 = vmatpush1.xpose.msra.mxu0 0.0
        %755 = vmatprep.subr.mxu0 0.0
        %756 = vmatpush1.xpose.msra.mxu0 0.0
        %757 = vmatprep.subr.mxu0 0.0
        %758 = vmatpush1.xpose.msra.mxu0 0.0
        %759 = vmatprep.subr.mxu0 0.0
        %760 = vmatpush1.xpose.msra.mxu0 0.0
        %761 = vmatprep.subr.mxu0 0.0
        %762 = vmatpush1.xpose.msra.mxu0 0.0
        %763 = vmatprep.subr.mxu0 0.0
        %764 = vmatpush1.xpose.msra.mxu0 0.0
        %765 = vmatprep.subr.mxu0 0.0
        %766 = vmatpush1.xpose.msra.mxu0 0.0
        %767 = vmatprep.subr.mxu0 0.0
        %768 = vmatpush1.xpose.msra.mxu0 %v735
        %769 = vmatprep.subr.mxu0 0.0
        %770 = vmatpush2.xpose.msra.mxu0 0.0
        %771 = vmatprep.subr.mxu0 0.0
        %772 = vmatpush2.xpose.msra.mxu0 0.0
        %773 = vmatprep.subr.mxu0 0.0
        %774 = vmatpush2.xpose.msra.mxu0 0.0
        %775 = vmatprep.subr.mxu0 0.0
        %776 = vmatpush2.xpose.msra.mxu0 0.0
        %777 = vmatprep.subr.mxu0 0.0
        %778 = vmatpush2.xpose.msra.mxu0 0.0
        %779 = vmatprep.subr.mxu0 0.0
        %780 = vmatpush2.xpose.msra.mxu0 0.0
        %781 = vmatprep.subr.mxu0 0.0
        %782 = vmatpush2.xpose.msra.mxu0 0.0
        %783 = vmatprep.subr.mxu0 0.0
        %784 = vmatpush2.xpose.msra.mxu0 0.0
        %785 = vmatprep.subr.mxu0 0.0
        %786 = vmatpush2.xpose.msra.mxu0 0.0
        %787 = vmatprep.subr.mxu0 0.0
        %788 = vmatpush2.xpose.msra.mxu0 0.0
        %789 = vmatprep.subr.mxu0 0.0
        %790 = vmatpush2.xpose.msra.mxu0 0.0
        %791 = vmatprep.subr.mxu0 0.0
        %792 = vmatpush2.xpose.msra.mxu0 0.0
        %793 = vmatprep.subr.mxu0 0.0
        %794 = vmatpush2.xpose.msra.mxu0 0.0
        %795 = vmatprep.subr.mxu0 0.0
        %796 = vmatpush2.xpose.msra.mxu0 0.0
        %797 = vmatprep.subr.mxu0 0.0
        %798 = vmatpush2.xpose.msra.mxu0 0.0
        %799 = vmatprep.subr.mxu0 0.0
        %800 = vmatpush2.xpose.msra.mxu0 0.0
        %801 = vmatprep.mubr.f32.mxu0 0.0
        %802 = vmatmul.mubr.f32.gmra.mxu0 %v729
        %v803 = vpop.f32.mrf.mxu0
        %v804 = vadd.f32 %v725, %v803
        %v805 = vpop.f32.mrf.mxu0
        %806 = vmatprep.mubr.f32.mxu0 0.0
        %807 = vmatmul.mubr.f32.gmra.mxu0 %v732
        %v808 = vpop.f32.mrf.mxu0
        %v809 = vadd.f32 %v725, %v808
        %v810 = vpop.f32.mrf.mxu0
        %811 = vdwg.mxu0
        %v812 = vsel %vm727, %v804, -inf
        %813 = vmax.xlane.f32.xlu0 %v812
        %v814 = vpop.xlane.xlu0 %813
        %v815 = vsel %vm727, %v809, -inf
        %816 = vmax.xlane.f32.xlu0 %v815
        %v817 = vpop.xlane.xlu0 %816
        %v818 = vsub.f32 %v804, %v814
        %v819 = vsub.f32 %v809, %v817
        %v820 = vmul.f32 %v818, 1.442695
        %v821 = vpow.pop %v820
        %v822 = vmul.f32 %v819, 1.442695
        %v823 = vpow.pop %v822
        %v824 = vsel %vm727, %v821, 0.0
        %825 = vadd.xlane.f32.xlu0 %v824
        %v826 = vpop.xlane.xlu0 %825
        %v827 = vsel %vm727, %v823, 0.0
        %828 = vadd.xlane.f32.xlu0 %v827
        %v829 = vpop.xlane.xlu0 %828
        %v830 = vrcp.pop %v826
        %v831 = vrcp.pop %v829
        %v832 = vmul.f32 %v821, %v830
        %v833 = vmul.f32 %v823, %v831
        %v835 = vsel %vm727, %v832, 0
        %v838 = vsel %vm727, %v833, 0
        %840 = vmatprep.subr.mxu0 0.0
        %841 = vmatpush1.msra.mxu0 0.0
        %842 = vmatprep.subr.mxu0 0.0
        %843 = vmatpush1.msra.mxu0 0.0
        %844 = vmatprep.subr.mxu0 0.0
        %845 = vmatpush1.msra.mxu0 0.0
        %846 = vmatprep.subr.mxu0 0.0
        %847 = vmatpush1.msra.mxu0 0.0
        %848 = vmatprep.subr.mxu0 0.0
        %849 = vmatpush1.msra.mxu0 0.0
        %850 = vmatprep.subr.mxu0 0.0
        %851 = vmatpush1.msra.mxu0 0.0
        %852 = vmatprep.subr.mxu0 0.0
        %853 = vmatpush1.msra.mxu0 0.0
        %854 = vmatprep.subr.mxu0 0.0
        %855 = vmatpush1.msra.mxu0 0.0
        %856 = vmatprep.subr.mxu0 0.0
        %857 = vmatpush1.msra.mxu0 0.0
        %858 = vmatprep.subr.mxu0 0.0
        %859 = vmatpush1.msra.mxu0 0.0
        %860 = vmatprep.subr.mxu0 0.0
        %861 = vmatpush1.msra.mxu0 0.0
        %862 = vmatprep.subr.mxu0 0.0
        %863 = vmatpush1.msra.mxu0 0.0
        %864 = vmatprep.subr.mxu0 0.0
        %865 = vmatpush1.msra.mxu0 0.0
        %866 = vmatprep.subr.mxu0 0.0
        %867 = vmatpush1.msra.mxu0 0.0
        %868 = vmatprep.subr.mxu0 0.0
        %869 = vmatpush1.msra.mxu0 0.0
        %870 = vmatprep.subr.mxu0 0.0
        %871 = vmatpush1.msra.mxu0 %v718
        %872 = vmatprep.subr.mxu0 0.0
        %873 = vmatpush2.msra.mxu0 0.0
        %874 = vmatprep.subr.mxu0 0.0
        %875 = vmatpush2.msra.mxu0 0.0
        %876 = vmatprep.subr.mxu0 0.0
        %877 = vmatpush2.msra.mxu0 0.0
        %878 = vmatprep.subr.mxu0 0.0
        %879 = vmatpush2.msra.mxu0 0.0
        %880 = vmatprep.subr.mxu0 0.0
        %881 = vmatpush2.msra.mxu0 0.0
        %882 = vmatprep.subr.mxu0 0.0
        %883 = vmatpush2.msra.mxu0 0.0
        %884 = vmatprep.subr.mxu0 0.0
        %885 = vmatpush2.msra.mxu0 0.0
        %886 = vmatprep.subr.mxu0 0.0
        %887 = vmatpush2.msra.mxu0 0.0
        %888 = vmatprep.subr.mxu0 0.0
        %889 = vmatpush2.msra.mxu0 0.0
        %890 = vmatprep.subr.mxu0 0.0
        %891 = vmatpush2.msra.mxu0 0.0
        %892 = vmatprep.subr.mxu0 0.0
        %893 = vmatpush2.msra.mxu0 0.0
        %894 = vmatprep.subr.mxu0 0.0
        %895 = vmatpush2.msra.mxu0 0.0
        %896 = vmatprep.subr.mxu0 0.0
        %897 = vmatpush2.msra.mxu0 0.0
        %898 = vmatprep.subr.mxu0 0.0
        %899 = vmatpush2.msra.mxu0 0.0
        %900 = vmatprep.subr.mxu0 0.0
        %901 = vmatpush2.msra.mxu0 0.0
        %902 = vmatprep.subr.mxu0 0.0
        %903 = vmatpush2.msra.mxu0 0.0
        %904 = vmatprep.mubr.f32.mxu0 0.0
        %905 = vmatmul.mubr.f32.gmra.mxu0 %v835
        %v906 = vpop.f32.mrf.mxu0
        %v907 = vadd.f32 0.0, %v906
        %v908 = vpop.f32.mrf.mxu0
        %909 = vmatprep.mubr.f32.mxu0 0.0
        %910 = vmatmul.mubr.f32.gmra.mxu0 %v838
        %v911 = vpop.f32.mrf.mxu0
        %v912 = vadd.f32 0.0, %v911
        %v913 = vpop.f32.mrf.mxu0
        %914 = vdwg.mxu0
        %915 = vrot.lane.b32.xlu0 %v549, 120
        %v916 = vpop.permute.xlu0 %915
        %917 = vrot.lane.b32.xlu0 %v554, 120
        %v918 = vpop.permute.xlu0 %917
        %919 = vrot.lane.b32.xlu0 %v636, 120
        %v920 = vpop.permute.xlu0 %919
        %v921 = vsel %vm727, %v916, 0
        %v923 = vsel %vm727, %v918, 0
        %v925 = vsel %vm727, %v920, 0
        %927 = vmatprep.subr.mxu0 0.0
        %928 = vmatpush1.xpose.msra.mxu0 0.0
        %929 = vmatprep.subr.mxu0 0.0
        %930 = vmatpush1.xpose.msra.mxu0 0.0
        %931 = vmatprep.subr.mxu0 0.0
        %932 = vmatpush1.xpose.msra.mxu0 0.0
        %933 = vmatprep.subr.mxu0 0.0
        %934 = vmatpush1.xpose.msra.mxu0 0.0
        %935 = vmatprep.subr.mxu0 0.0
        %936 = vmatpush1.xpose.msra.mxu0 0.0
        %937 = vmatprep.subr.mxu0 0.0
        %938 = vmatpush1.xpose.msra.mxu0 0.0
        %939 = vmatprep.subr.mxu0 0.0
        %940 = vmatpush1.xpose.msra.mxu0 0.0
        %941 = vmatprep.subr.mxu0 0.0
        %942 = vmatpush1.xpose.msra.mxu0 0.0
        %943 = vmatprep.subr.mxu0 0.0
        %944 = vmatpush1.xpose.msra.mxu0 0.0
        %945 = vmatprep.subr.mxu0 0.0
        %946 = vmatpush1.xpose.msra.mxu0 0.0
        %947 = vmatprep.subr.mxu0 0.0
        %948 = vmatpush1.xpose.msra.mxu0 0.0
        %949 = vmatprep.subr.mxu0 0.0
        %950 = vmatpush1.xpose.msra.mxu0 0.0
        %951 = vmatprep.subr.mxu0 0.0
        %952 = vmatpush1.xpose.msra.mxu0 0.0
        %953 = vmatprep.subr.mxu0 0.0
        %954 = vmatpush1.xpose.msra.mxu0 0.0
        %955 = vmatprep.subr.mxu0 0.0
        %956 = vmatpush1.xpose.msra.mxu0 0.0
        %957 = vmatprep.subr.mxu0 0.0
        %958 = vmatpush1.xpose.msra.mxu0 %v925
        %959 = vmatprep.subr.mxu0 0.0
        %960 = vmatpush2.xpose.msra.mxu0 0.0
        %961 = vmatprep.subr.mxu0 0.0
        %962 = vmatpush2.xpose.msra.mxu0 0.0
        %963 = vmatprep.subr.mxu0 0.0
        %964 = vmatpush2.xpose.msra.mxu0 0.0
        %965 = vmatprep.subr.mxu0 0.0
        %966 = vmatpush2.xpose.msra.mxu0 0.0
        %967 = vmatprep.subr.mxu0 0.0
        %968 = vmatpush2.xpose.msra.mxu0 0.0
        %969 = vmatprep.subr.mxu0 0.0
        %970 = vmatpush2.xpose.msra.mxu0 0.0
        %971 = vmatprep.subr.mxu0 0.0
        %972 = vmatpush2.xpose.msra.mxu0 0.0
        %973 = vmatprep.subr.mxu0 0.0
        %974 = vmatpush2.xpose.msra.mxu0 0.0
        %975 = vmatprep.subr.mxu0 0.0
        %976 = vmatpush2.xpose.msra.mxu0 0.0
        %977 = vmatprep.subr.mxu0 0.0
        %978 = vmatpush2.xpose.msra.mxu0 0.0
        %979 = vmatprep.subr.mxu0 0.0
        %980 = vmatpush2.xpose.msra.mxu0 0.0
        %981 = vmatprep.subr.mxu0 0.0
        %982 = vmatpush2.xpose.msra.mxu0 0.0
        %983 = vmatprep.subr.mxu0 0.0
        %984 = vmatpush2.xpose.msra.mxu0 0.0
        %985 = vmatprep.subr.mxu0 0.0
        %986 = vmatpush2.xpose.msra.mxu0 0.0
        %987 = vmatprep.subr.mxu0 0.0
        %988 = vmatpush2.xpose.msra.mxu0 0.0
        %989 = vmatprep.subr.mxu0 0.0
        %990 = vmatpush2.xpose.msra.mxu0 0.0
        %991 = vmatprep.mubr.f32.mxu0 0.0
        %992 = vmatmul.mubr.f32.gmra.mxu0 %v921
        %v993 = vpop.f32.mrf.mxu0
        %v994 = vadd.f32 %v725, %v993
        %v995 = vpop.f32.mrf.mxu0
        %996 = vmatprep.mubr.f32.mxu0 0.0
        %997 = vmatmul.mubr.f32.gmra.mxu0 %v923
        %v998 = vpop.f32.mrf.mxu0
        %v999 = vadd.f32 %v725, %v998
        %v1000 = vpop.f32.mrf.mxu0
        %1001 = vdwg.mxu0
        %v1002 = vsel %vm727, %v994, -inf
        %1003 = vmax.xlane.f32.xlu0 %v1002
        %v1004 = vpop.xlane.xlu0 %1003
        %v1005 = vsel %vm727, %v999, -inf
        %1006 = vmax.xlane.f32.xlu0 %v1005
        %v1007 = vpop.xlane.xlu0 %1006
        %v1008 = vsub.f32 %v994, %v1004
        %v1009 = vsub.f32 %v999, %v1007
        %v1010 = vmul.f32 %v1008, 1.442695
        %v1011 = vpow.pop %v1010
        %v1012 = vmul.f32 %v1009, 1.442695
        %v1013 = vpow.pop %v1012
        %v1014 = vsel %vm727, %v1011, 0.0
        %1015 = vadd.xlane.f32.xlu0 %v1014
        %v1016 = vpop.xlane.xlu0 %1015
        %v1017 = vsel %vm727, %v1013, 0.0
        %1018 = vadd.xlane.f32.xlu0 %v1017
        %v1019 = vpop.xlane.xlu0 %1018
        %v1020 = vrcp.pop %v1016
        %v1021 = vrcp.pop %v1019
        %v1022 = vmul.f32 %v1011, %v1020
        %v1023 = vmul.f32 %v1013, %v1021
        %1025 = vrot.lane.b32.xlu0 %v718, 120
        %v1026 = vpop.permute.xlu0 %1025
        %v1029 = vsel %vm727, %v1022, 0
        %v1032 = vsel %vm727, %v1023, 0
        %1034 = vmatprep.subr.mxu0 0.0
        %1035 = vmatpush1.msra.mxu0 0.0
        %1036 = vmatprep.subr.mxu0 0.0
        %1037 = vmatpush1.msra.mxu0 0.0
        %1038 = vmatprep.subr.mxu0 0.0
        %1039 = vmatpush1.msra.mxu0 0.0
        %1040 = vmatprep.subr.mxu0 0.0
        %1041 = vmatpush1.msra.mxu0 0.0
        %1042 = vmatprep.subr.mxu0 0.0
        %1043 = vmatpush1.msra.mxu0 0.0
        %1044 = vmatprep.subr.mxu0 0.0
        %1045 = vmatpush1.msra.mxu0 0.0
        %1046 = vmatprep.subr.mxu0 0.0
        %1047 = vmatpush1.msra.mxu0 0.0
        %1048 = vmatprep.subr.mxu0 0.0
        %1049 = vmatpush1.msra.mxu0 0.0
        %1050 = vmatprep.subr.mxu0 0.0
        %1051 = vmatpush1.msra.mxu0 0.0
        %1052 = vmatprep.subr.mxu0 0.0
        %1053 = vmatpush1.msra.mxu0 0.0
        %1054 = vmatprep.subr.mxu0 0.0
        %1055 = vmatpush1.msra.mxu0 0.0
        %1056 = vmatprep.subr.mxu0 0.0
        %1057 = vmatpush1.msra.mxu0 0.0
        %1058 = vmatprep.subr.mxu0 0.0
        %1059 = vmatpush1.msra.mxu0 0.0
        %1060 = vmatprep.subr.mxu0 0.0
        %1061 = vmatpush1.msra.mxu0 0.0
        %1062 = vmatprep.subr.mxu0 0.0
        %1063 = vmatpush1.msra.mxu0 0.0
        %1064 = vmatprep.subr.mxu0 0.0
        %1065 = vmatpush1.msra.mxu0 %v1026
        %1066 = vmatprep.subr.mxu0 0.0
        %1067 = vmatpush2.msra.mxu0 0.0
        %1068 = vmatprep.subr.mxu0 0.0
        %1069 = vmatpush2.msra.mxu0 0.0
        %1070 = vmatprep.subr.mxu0 0.0
        %1071 = vmatpush2.msra.mxu0 0.0
        %1072 = vmatprep.subr.mxu0 0.0
        %1073 = vmatpush2.msra.mxu0 0.0
        %1074 = vmatprep.subr.mxu0 0.0
        %1075 = vmatpush2.msra.mxu0 0.0
        %1076 = vmatprep.subr.mxu0 0.0
        %1077 = vmatpush2.msra.mxu0 0.0
        %1078 = vmatprep.subr.mxu0 0.0
        %1079 = vmatpush2.msra.mxu0 0.0
        %1080 = vmatprep.subr.mxu0 0.0
        %1081 = vmatpush2.msra.mxu0 0.0
        %1082 = vmatprep.subr.mxu0 0.0
        %1083 = vmatpush2.msra.mxu0 0.0
        %1084 = vmatprep.subr.mxu0 0.0
        %1085 = vmatpush2.msra.mxu0 0.0
        %1086 = vmatprep.subr.mxu0 0.0
        %1087 = vmatpush2.msra.mxu0 0.0
        %1088 = vmatprep.subr.mxu0 0.0
        %1089 = vmatpush2.msra.mxu0 0.0
        %1090 = vmatprep.subr.mxu0 0.0
        %1091 = vmatpush2.msra.mxu0 0.0
        %1092 = vmatprep.subr.mxu0 0.0
        %1093 = vmatpush2.msra.mxu0 0.0
        %1094 = vmatprep.subr.mxu0 0.0
        %1095 = vmatpush2.msra.mxu0 0.0
        %1096 = vmatprep.subr.mxu0 0.0
        %1097 = vmatpush2.msra.mxu0 0.0
        %1098 = vmatprep.mubr.f32.mxu0 0.0
        %1099 = vmatmul.mubr.f32.gmra.mxu0 %v1029
        %v1100 = vpop.f32.mrf.mxu0
        %v1101 = vadd.f32 0.0, %v1100
        %v1102 = vpop.f32.mrf.mxu0
        %1103 = vmatprep.mubr.f32.mxu0 0.0
        %1104 = vmatmul.mubr.f32.gmra.mxu0 %v1032
        %v1105 = vpop.f32.mrf.mxu0
        %v1106 = vadd.f32 0.0, %v1105
        %v1107 = vpop.f32.mrf.mxu0
        %1108 = vdwg.mxu0
        %1109 = vrot.lane.b32.xlu0 %v549, 112
        %v1110 = vpop.permute.xlu0 %1109
        %1111 = vrot.lane.b32.xlu0 %v554, 112
        %v1112 = vpop.permute.xlu0 %1111
        %1113 = vrot.lane.b32.xlu0 %v636, 112
        %v1114 = vpop.permute.xlu0 %1113
        %v1115 = vsel %vm727, %v1110, 0
        %v1117 = vsel %vm727, %v1112, 0
        %v1119 = vsel %vm727, %v1114, 0
        %1121 = vmatprep.subr.mxu0 0.0
        %1122 = vmatpush1.xpose.msra.mxu0 0.0
        %1123 = vmatprep.subr.mxu0 0.0
        %1124 = vmatpush1.xpose.msra.mxu0 0.0
        %1125 = vmatprep.subr.mxu0 0.0
        %1126 = vmatpush1.xpose.msra.mxu0 0.0
        %1127 = vmatprep.subr.mxu0 0.0
        %1128 = vmatpush1.xpose.msra.mxu0 0.0
        %1129 = vmatprep.subr.mxu0 0.0
        %1130 = vmatpush1.xpose.msra.mxu0 0.0
        %1131 = vmatprep.subr.mxu0 0.0
        %1132 = vmatpush1.xpose.msra.mxu0 0.0
        %1133 = vmatprep.subr.mxu0 0.0
        %1134 = vmatpush1.xpose.msra.mxu0 0.0
        %1135 = vmatprep.subr.mxu0 0.0
        %1136 = vmatpush1.xpose.msra.mxu0 0.0
        %1137 = vmatprep.subr.mxu0 0.0
        %1138 = vmatpush1.xpose.msra.mxu0 0.0
        %1139 = vmatprep.subr.mxu0 0.0
        %1140 = vmatpush1.xpose.msra.mxu0 0.0
        %1141 = vmatprep.subr.mxu0 0.0
        %1142 = vmatpush1.xpose.msra.mxu0 0.0
        %1143 = vmatprep.subr.mxu0 0.0
        %1144 = vmatpush1.xpose.msra.mxu0 0.0
        %1145 = vmatprep.subr.mxu0 0.0
        %1146 = vmatpush1.xpose.msra.mxu0 0.0
        %1147 = vmatprep.subr.mxu0 0.0
        %1148 = vmatpush1.xpose.msra.mxu0 0.0
        %1149 = vmatprep.subr.mxu0 0.0
        %1150 = vmatpush1.xpose.msra.mxu0 0.0
        %1151 = vmatprep.subr.mxu0 0.0
        %1152 = vmatpush1.xpose.msra.mxu0 %v1119
        %1153 = vmatprep.subr.mxu0 0.0
        %1154 = vmatpush2.xpose.msra.mxu0 0.0
        %1155 = vmatprep.subr.mxu0 0.0
        %1156 = vmatpush2.xpose.msra.mxu0 0.0
        %1157 = vmatprep.subr.mxu0 0.0
        %1158 = vmatpush2.xpose.msra.mxu0 0.0
        %1159 = vmatprep.subr.mxu0 0.0
        %1160 = vmatpush2.xpose.msra.mxu0 0.0
        %1161 = vmatprep.subr.mxu0 0.0
        %1162 = vmatpush2.xpose.msra.mxu0 0.0
        %1163 = vmatprep.subr.mxu0 0.0
        %1164 = vmatpush2.xpose.msra.mxu0 0.0
        %1165 = vmatprep.subr.mxu0 0.0
        %1166 = vmatpush2.xpose.msra.mxu0 0.0
        %1167 = vmatprep.subr.mxu0 0.0
        %1168 = vmatpush2.xpose.msra.mxu0 0.0
        %1169 = vmatprep.subr.mxu0 0.0
        %1170 = vmatpush2.xpose.msra.mxu0 0.0
        %1171 = vmatprep.subr.mxu0 0.0
        %1172 = vmatpush2.xpose.msra.mxu0 0.0
        %1173 = vmatprep.subr.mxu0 0.0
        %1174 = vmatpush2.xpose.msra.mxu0 0.0
        %1175 = vmatprep.subr.mxu0 0.0
        %1176 = vmatpush2.xpose.msra.mxu0 0.0
        %1177 = vmatprep.subr.mxu0 0.0
        %1178 = vmatpush2.xpose.msra.mxu0 0.0
        %1179 = vmatprep.subr.mxu0 0.0
        %1180 = vmatpush2.xpose.msra.mxu0 0.0
        %1181 = vmatprep.subr.mxu0 0.0
        %1182 = vmatpush2.xpose.msra.mxu0 0.0
        %1183 = vmatprep.subr.mxu0 0.0
        %1184 = vmatpush2.xpose.msra.mxu0 0.0
        %1185 = vmatprep.mubr.f32.mxu0 0.0
        %1186 = vmatmul.mubr.f32.gmra.mxu0 %v1115
        %v1187 = vpop.f32.mrf.mxu0
        %v1188 = vadd.f32 %v725, %v1187
        %v1189 = vpop.f32.mrf.mxu0
        %1190 = vmatprep.mubr.f32.mxu0 0.0
        %1191 = vmatmul.mubr.f32.gmra.mxu0 %v1117
        %v1192 = vpop.f32.mrf.mxu0
        %v1193 = vadd.f32 %v725, %v1192
        %v1194 = vpop.f32.mrf.mxu0
        %1195 = vdwg.mxu0
        %v1196 = vsel %vm727, %v1188, -inf
        %1197 = vmax.xlane.f32.xlu0 %v1196
        %v1198 = vpop.xlane.xlu0 %1197
        %v1199 = vsel %vm727, %v1193, -inf
        %1200 = vmax.xlane.f32.xlu0 %v1199
        %v1201 = vpop.xlane.xlu0 %1200
        %v1202 = vsub.f32 %v1188, %v1198
        %v1203 = vsub.f32 %v1193, %v1201
        %v1204 = vmul.f32 %v1202, 1.442695
        %v1205 = vpow.pop %v1204
        %v1206 = vmul.f32 %v1203, 1.442695
        %v1207 = vpow.pop %v1206
        %v1208 = vsel %vm727, %v1205, 0.0
        %1209 = vadd.xlane.f32.xlu0 %v1208
        %v1210 = vpop.xlane.xlu0 %1209
        %v1211 = vsel %vm727, %v1207, 0.0
        %1212 = vadd.xlane.f32.xlu0 %v1211
        %v1213 = vpop.xlane.xlu0 %1212
        %v1214 = vrcp.pop %v1210
        %v1215 = vrcp.pop %v1213
        %v1216 = vmul.f32 %v1205, %v1214
        %v1217 = vmul.f32 %v1207, %v1215
        %1218 = vrot.lane.b32.xlu0 %v718, 112
        %v1219 = vpop.permute.xlu0 %1218
        %v1222 = vsel %vm727, %v1216, 0
        %v1225 = vsel %vm727, %v1217, 0
        %1227 = vmatprep.subr.mxu0 0.0
        %1228 = vmatpush1.msra.mxu0 0.0
        %1229 = vmatprep.subr.mxu0 0.0
        %1230 = vmatpush1.msra.mxu0 0.0
        %1231 = vmatprep.subr.mxu0 0.0
        %1232 = vmatpush1.msra.mxu0 0.0
        %1233 = vmatprep.subr.mxu0 0.0
        %1234 = vmatpush1.msra.mxu0 0.0
        %1235 = vmatprep.subr.mxu0 0.0
        %1236 = vmatpush1.msra.mxu0 0.0
        %1237 = vmatprep.subr.mxu0 0.0
        %1238 = vmatpush1.msra.mxu0 0.0
        %1239 = vmatprep.subr.mxu0 0.0
        %1240 = vmatpush1.msra.mxu0 0.0
        %1241 = vmatprep.subr.mxu0 0.0
        %1242 = vmatpush1.msra.mxu0 0.0
        %1243 = vmatprep.subr.mxu0 0.0
        %1244 = vmatpush1.msra.mxu0 0.0
        %1245 = vmatprep.subr.mxu0 0.0
        %1246 = vmatpush1.msra.mxu0 0.0
        %1247 = vmatprep.subr.mxu0 0.0
        %1248 = vmatpush1.msra.mxu0 0.0
        %1249 = vmatprep.subr.mxu0 0.0
        %1250 = vmatpush1.msra.mxu0 0.0
        %1251 = vmatprep.subr.mxu0 0.0
        %1252 = vmatpush1.msra.mxu0 0.0
        %1253 = vmatprep.subr.mxu0 0.0
        %1254 = vmatpush1.msra.mxu0 0.0
        %1255 = vmatprep.subr.mxu0 0.0
        %1256 = vmatpush1.msra.mxu0 0.0
        %1257 = vmatprep.subr.mxu0 0.0
        %1258 = vmatpush1.msra.mxu0 %v1219
        %1259 = vmatprep.subr.mxu0 0.0
        %1260 = vmatpush2.msra.mxu0 0.0
        %1261 = vmatprep.subr.mxu0 0.0
        %1262 = vmatpush2.msra.mxu0 0.0
        %1263 = vmatprep.subr.mxu0 0.0
        %1264 = vmatpush2.msra.mxu0 0.0
        %1265 = vmatprep.subr.mxu0 0.0
        %1266 = vmatpush2.msra.mxu0 0.0
        %1267 = vmatprep.subr.mxu0 0.0
        %1268 = vmatpush2.msra.mxu0 0.0
        %1269 = vmatprep.subr.mxu0 0.0
        %1270 = vmatpush2.msra.mxu0 0.0
        %1271 = vmatprep.subr.mxu0 0.0
        %1272 = vmatpush2.msra.mxu0 0.0
        %1273 = vmatprep.subr.mxu0 0.0
        %1274 = vmatpush2.msra.mxu0 0.0
        %1275 = vmatprep.subr.mxu0 0.0
        %1276 = vmatpush2.msra.mxu0 0.0
        %1277 = vmatprep.subr.mxu0 0.0
        %1278 = vmatpush2.msra.mxu0 0.0
        %1279 = vmatprep.subr.mxu0 0.0
        %1280 = vmatpush2.msra.mxu0 0.0
        %1281 = vmatprep.subr.mxu0 0.0
        %1282 = vmatpush2.msra.mxu0 0.0
        %1283 = vmatprep.subr.mxu0 0.0
        %1284 = vmatpush2.msra.mxu0 0.0
        %1285 = vmatprep.subr.mxu0 0.0
        %1286 = vmatpush2.msra.mxu0 0.0
        %1287 = vmatprep.subr.mxu0 0.0
        %1288 = vmatpush2.msra.mxu0 0.0
        %1289 = vmatprep.subr.mxu0 0.0
        %1290 = vmatpush2.msra.mxu0 0.0
        %1291 = vmatprep.mubr.f32.mxu0 0.0
        %1292 = vmatmul.mubr.f32.gmra.mxu0 %v1222
        %v1293 = vpop.f32.mrf.mxu0
        %v1294 = vadd.f32 0.0, %v1293
        %v1295 = vpop.f32.mrf.mxu0
        %1296 = vmatprep.mubr.f32.mxu0 0.0
        %1297 = vmatmul.mubr.f32.gmra.mxu0 %v1225
        %v1298 = vpop.f32.mrf.mxu0
        %v1299 = vadd.f32 0.0, %v1298
        %v1300 = vpop.f32.mrf.mxu0
        %1301 = vdwg.mxu0
        %1302 = vrot.lane.b32.xlu0 %v549, 104
        %v1303 = vpop.permute.xlu0 %1302
        %1304 = vrot.lane.b32.xlu0 %v554, 104
        %v1305 = vpop.permute.xlu0 %1304
        %1306 = vrot.lane.b32.xlu0 %v636, 104
        %v1307 = vpop.permute.xlu0 %1306
        %v1308 = vsel %vm727, %v1303, 0
        %v1310 = vsel %vm727, %v1305, 0
        %v1312 = vsel %vm727, %v1307, 0
        %1314 = vmatprep.subr.mxu0 0.0
        %1315 = vmatpush1.xpose.msra.mxu0 0.0
        %1316 = vmatprep.subr.mxu0 0.0
        %1317 = vmatpush1.xpose.msra.mxu0 0.0
        %1318 = vmatprep.subr.mxu0 0.0
        %1319 = vmatpush1.xpose.msra.mxu0 0.0
        %1320 = vmatprep.subr.mxu0 0.0
        %1321 = vmatpush1.xpose.msra.mxu0 0.0
        %1322 = vmatprep.subr.mxu0 0.0
        %1323 = vmatpush1.xpose.msra.mxu0 0.0
        %1324 = vmatprep.subr.mxu0 0.0
        %1325 = vmatpush1.xpose.msra.mxu0 0.0
        %1326 = vmatprep.subr.mxu0 0.0
        %1327 = vmatpush1.xpose.msra.mxu0 0.0
        %1328 = vmatprep.subr.mxu0 0.0
        %1329 = vmatpush1.xpose.msra.mxu0 0.0
        %1330 = vmatprep.subr.mxu0 0.0
        %1331 = vmatpush1.xpose.msra.mxu0 0.0
        %1332 = vmatprep.subr.mxu0 0.0
        %1333 = vmatpush1.xpose.msra.mxu0 0.0
        %1334 = vmatprep.subr.mxu0 0.0
        %1335 = vmatpush1.xpose.msra.mxu0 0.0
        %1336 = vmatprep.subr.mxu0 0.0
        %1337 = vmatpush1.xpose.msra.mxu0 0.0
        %1338 = vmatprep.subr.mxu0 0.0
        %1339 = vmatpush1.xpose.msra.mxu0 0.0
        %1340 = vmatprep.subr.mxu0 0.0
        %1341 = vmatpush1.xpose.msra.mxu0 0.0
        %1342 = vmatprep.subr.mxu0 0.0
        %1343 = vmatpush1.xpose.msra.mxu0 0.0
        %1344 = vmatprep.subr.mxu0 0.0
        %1345 = vmatpush1.xpose.msra.mxu0 %v1312
        %1346 = vmatprep.subr.mxu0 0.0
        %1347 = vmatpush2.xpose.msra.mxu0 0.0
        %1348 = vmatprep.subr.mxu0 0.0
        %1349 = vmatpush2.xpose.msra.mxu0 0.0
        %1350 = vmatprep.subr.mxu0 0.0
        %1351 = vmatpush2.xpose.msra.mxu0 0.0
        %1352 = vmatprep.subr.mxu0 0.0
        %1353 = vmatpush2.xpose.msra.mxu0 0.0
        %1354 = vmatprep.subr.mxu0 0.0
        %1355 = vmatpush2.xpose.msra.mxu0 0.0
        %1356 = vmatprep.subr.mxu0 0.0
        %1357 = vmatpush2.xpose.msra.mxu0 0.0
        %1358 = vmatprep.subr.mxu0 0.0
        %1359 = vmatpush2.xpose.msra.mxu0 0.0
        %1360 = vmatprep.subr.mxu0 0.0
        %1361 = vmatpush2.xpose.msra.mxu0 0.0
        %1362 = vmatprep.subr.mxu0 0.0
        %1363 = vmatpush2.xpose.msra.mxu0 0.0
        %1364 = vmatprep.subr.mxu0 0.0
        %1365 = vmatpush2.xpose.msra.mxu0 0.0
        %1366 = vmatprep.subr.mxu0 0.0
        %1367 = vmatpush2.xpose.msra.mxu0 0.0
        %1368 = vmatprep.subr.mxu0 0.0
        %1369 = vmatpush2.xpose.msra.mxu0 0.0
        %1370 = vmatprep.subr.mxu0 0.0
        %1371 = vmatpush2.xpose.msra.mxu0 0.0
        %1372 = vmatprep.subr.mxu0 0.0
        %1373 = vmatpush2.xpose.msra.mxu0 0.0
        %1374 = vmatprep.subr.mxu0 0.0
        %1375 = vmatpush2.xpose.msra.mxu0 0.0
        %1376 = vmatprep.subr.mxu0 0.0
        %1377 = vmatpush2.xpose.msra.mxu0 0.0
        %1378 = vmatprep.mubr.f32.mxu0 0.0
        %1379 = vmatmul.mubr.f32.gmra.mxu0 %v1308
        %v1380 = vpop.f32.mrf.mxu0
        %v1381 = vadd.f32 %v725, %v1380
        %v1382 = vpop.f32.mrf.mxu0
        %1383 = vmatprep.mubr.f32.mxu0 0.0
        %1384 = vmatmul.mubr.f32.gmra.mxu0 %v1310
        %v1385 = vpop.f32.mrf.mxu0
        %v1386 = vadd.f32 %v725, %v1385
        %v1387 = vpop.f32.mrf.mxu0
        %1388 = vdwg.mxu0
        %v1389 = vsel %vm727, %v1381, -inf
        %1390 = vmax.xlane.f32.xlu0 %v1389
        %v1391 = vpop.xlane.xlu0 %1390
        %v1392 = vsel %vm727, %v1386, -inf
        %1393 = vmax.xlane.f32.xlu0 %v1392
        %v1394 = vpop.xlane.xlu0 %1393
        %v1395 = vsub.f32 %v1381, %v1391
        %v1396 = vsub.f32 %v1386, %v1394
        %v1397 = vmul.f32 %v1395, 1.442695
        %v1398 = vpow.pop %v1397
        %v1399 = vmul.f32 %v1396, 1.442695
        %v1400 = vpow.pop %v1399
        %v1401 = vsel %vm727, %v1398, 0.0
        %1402 = vadd.xlane.f32.xlu0 %v1401
        %v1403 = vpop.xlane.xlu0 %1402
        %v1404 = vsel %vm727, %v1400, 0.0
        %1405 = vadd.xlane.f32.xlu0 %v1404
        %v1406 = vpop.xlane.xlu0 %1405
        %v1407 = vrcp.pop %v1403
        %v1408 = vrcp.pop %v1406
        %v1409 = vmul.f32 %v1398, %v1407
        %v1410 = vmul.f32 %v1400, %v1408
        %1411 = vrot.lane.b32.xlu0 %v718, 104
        %v1412 = vpop.permute.xlu0 %1411
        %v1415 = vsel %vm727, %v1409, 0
        %v1418 = vsel %vm727, %v1410, 0
        %1420 = vmatprep.subr.mxu0 0.0
        %1421 = vmatpush1.msra.mxu0 0.0
        %1422 = vmatprep.subr.mxu0 0.0
        %1423 = vmatpush1.msra.mxu0 0.0
        %1424 = vmatprep.subr.mxu0 0.0
        %1425 = vmatpush1.msra.mxu0 0.0
        %1426 = vmatprep.subr.mxu0 0.0
        %1427 = vmatpush1.msra.mxu0 0.0
        %1428 = vmatprep.subr.mxu0 0.0
        %1429 = vmatpush1.msra.mxu0 0.0
        %1430 = vmatprep.subr.mxu0 0.0
        %1431 = vmatpush1.msra.mxu0 0.0
        %1432 = vmatprep.subr.mxu0 0.0
        %1433 = vmatpush1.msra.mxu0 0.0
        %1434 = vmatprep.subr.mxu0 0.0
        %1435 = vmatpush1.msra.mxu0 0.0
        %1436 = vmatprep.subr.mxu0 0.0
        %1437 = vmatpush1.msra.mxu0 0.0
        %1438 = vmatprep.subr.mxu0 0.0
        %1439 = vmatpush1.msra.mxu0 0.0
        %1440 = vmatprep.subr.mxu0 0.0
        %1441 = vmatpush1.msra.mxu0 0.0
        %1442 = vmatprep.subr.mxu0 0.0
        %1443 = vmatpush1.msra.mxu0 0.0
        %1444 = vmatprep.subr.mxu0 0.0
        %1445 = vmatpush1.msra.mxu0 0.0
        %1446 = vmatprep.subr.mxu0 0.0
        %1447 = vmatpush1.msra.mxu0 0.0
        %1448 = vmatprep.subr.mxu0 0.0
        %1449 = vmatpush1.msra.mxu0 0.0
        %1450 = vmatprep.subr.mxu0 0.0
        %1451 = vmatpush1.msra.mxu0 %v1412
        %1452 = vmatprep.subr.mxu0 0.0
        %1453 = vmatpush2.msra.mxu0 0.0
        %1454 = vmatprep.subr.mxu0 0.0
        %1455 = vmatpush2.msra.mxu0 0.0
        %1456 = vmatprep.subr.mxu0 0.0
        %1457 = vmatpush2.msra.mxu0 0.0
        %1458 = vmatprep.subr.mxu0 0.0
        %1459 = vmatpush2.msra.mxu0 0.0
        %1460 = vmatprep.subr.mxu0 0.0
        %1461 = vmatpush2.msra.mxu0 0.0
        %1462 = vmatprep.subr.mxu0 0.0
        %1463 = vmatpush2.msra.mxu0 0.0
        %1464 = vmatprep.subr.mxu0 0.0
        %1465 = vmatpush2.msra.mxu0 0.0
        %1466 = vmatprep.subr.mxu0 0.0
        %1467 = vmatpush2.msra.mxu0 0.0
        %1468 = vmatprep.subr.mxu0 0.0
        %1469 = vmatpush2.msra.mxu0 0.0
        %1470 = vmatprep.subr.mxu0 0.0
        %1471 = vmatpush2.msra.mxu0 0.0
        %1472 = vmatprep.subr.mxu0 0.0
        %1473 = vmatpush2.msra.mxu0 0.0
        %1474 = vmatprep.subr.mxu0 0.0
        %1475 = vmatpush2.msra.mxu0 0.0
        %1476 = vmatprep.subr.mxu0 0.0
        %1477 = vmatpush2.msra.mxu0 0.0
        %1478 = vmatprep.subr.mxu0 0.0
        %1479 = vmatpush2.msra.mxu0 0.0
        %1480 = vmatprep.subr.mxu0 0.0
        %1481 = vmatpush2.msra.mxu0 0.0
        %1482 = vmatprep.subr.mxu0 0.0
        %1483 = vmatpush2.msra.mxu0 0.0
        %1484 = vmatprep.mubr.f32.mxu0 0.0
        %1485 = vmatmul.mubr.f32.gmra.mxu0 %v1415
        %v1486 = vpop.f32.mrf.mxu0
        %v1487 = vadd.f32 0.0, %v1486
        %v1488 = vpop.f32.mrf.mxu0
        %1489 = vmatprep.mubr.f32.mxu0 0.0
        %1490 = vmatmul.mubr.f32.gmra.mxu0 %v1418
        %v1491 = vpop.f32.mrf.mxu0
        %v1492 = vadd.f32 0.0, %v1491
        %v1493 = vpop.f32.mrf.mxu0
        %1494 = vdwg.mxu0
        %1497 = vrot.lane.b32.xlu0 %v1101, 8
        %v1498 = vpop.permute.xlu0 %1497
        %1499 = vrot.lane.b32.xlu0 %v1106, 8
        %v1500 = vpop.permute.xlu0 %1499
        %1505 = vrot.lane.b32.xlu0 %v1294, 16
        %v1506 = vpop.permute.xlu0 %1505
        %1507 = vrot.lane.b32.xlu0 %v1299, 16
        %v1508 = vpop.permute.xlu0 %1507
        %1513 = vrot.lane.b32.xlu0 %v1487, 24
        %v1514 = vpop.permute.xlu0 %1513
        %1515 = vrot.lane.b32.xlu0 %v1492, 24
        %v1516 = vpop.permute.xlu0 %1515
        %v1519 = vsel %vm727, %v907, %v1498
        %v1520 = vsel %vm727, %v912, %v1500
        %vm1521 = vcmask 130048
        %v1522 = vsel %vm1521, %v1519, %v1506
        %v1523 = vsel %vm1521, %v1520, %v1508
        %vm1524 = vcmask 195584
        %v1525 = vsel %vm1524, %v1522, %v1514
        %v1526 = vsel %vm1524, %v1523, %v1516
        %s1527 = scalar_lea.vmem [#allocation10], 96
        %v1528 = vld [vmem:[%s1527] sm:$0xff]
        %v1529 = vld [vmem:[%s1527 + $0x8] sm:$0xff]
        %v1530 = vld [vmem:[%s1527 + $0x10] sm:$0xff]
        %v1531 = vld [vmem:[%s1527 + $0x18] sm:$0xff]
        %v1532 = vlaneseq
        %v1533 = vshrl.u32 %v1532, 7
        %v1534 = vsub.s32 3, %v1533
        %v1535 = vrot.slane %v466, %v1534
        %v1537 = vsel %vm475, %v1525, 0
        %v1540 = vsel %vm475, %v1526, 0
        %1542 = vmatprep.subr.mxu0 0.0
        %1543 = vmatpush1.msra.mxu0 0.0
        %1544 = vmatprep.subr.mxu0 0.0
        %1545 = vmatpush1.msra.mxu0 0.0
        %1546 = vmatprep.subr.mxu0 0.0
        %1547 = vmatpush1.msra.mxu0 0.0
        %1548 = vmatprep.subr.mxu0 0.0
        %1549 = vmatpush1.msra.mxu0 0.0
        %1550 = vmatprep.subr.mxu0 0.0
        %1551 = vmatpush1.msra.mxu0 0.0
        %1552 = vmatprep.subr.mxu0 0.0
        %1553 = vmatpush1.msra.mxu0 0.0
        %1554 = vmatprep.subr.mxu0 0.0
        %1555 = vmatpush1.msra.mxu0 0.0
        %1556 = vmatprep.subr.mxu0 0.0
        %1557 = vmatpush1.msra.mxu0 0.0
        %1558 = vmatprep.subr.mxu0 0.0
        %1559 = vmatpush1.msra.mxu0 0.0
        %1560 = vmatprep.subr.mxu0 0.0
        %1561 = vmatpush1.msra.mxu0 0.0
        %1562 = vmatprep.subr.mxu0 0.0
        %1563 = vmatpush1.msra.mxu0 0.0
        %1564 = vmatprep.subr.mxu0 0.0
        %1565 = vmatpush1.msra.mxu0 0.0
        %1566 = vmatprep.subr.mxu0 0.0
        %1567 = vmatpush1.msra.mxu0 %v1531
        %1568 = vmatprep.subr.mxu0 0.0
        %1569 = vmatpush1.msra.mxu0 %v1530
        %1570 = vmatprep.subr.mxu0 0.0
        %1571 = vmatpush1.msra.mxu0 %v1529
        %1572 = vmatprep.subr.mxu0 0.0
        %1573 = vmatpush1.msra.mxu0 %v1528
        %1574 = vmatprep.subr.mxu0 0.0
        %1575 = vmatpush2.msra.mxu0 0.0
        %1576 = vmatprep.subr.mxu0 0.0
        %1577 = vmatpush2.msra.mxu0 0.0
        %1578 = vmatprep.subr.mxu0 0.0
        %1579 = vmatpush2.msra.mxu0 0.0
        %1580 = vmatprep.subr.mxu0 0.0
        %1581 = vmatpush2.msra.mxu0 0.0
        %1582 = vmatprep.subr.mxu0 0.0
        %1583 = vmatpush2.msra.mxu0 0.0
        %1584 = vmatprep.subr.mxu0 0.0
        %1585 = vmatpush2.msra.mxu0 0.0
        %1586 = vmatprep.subr.mxu0 0.0
        %1587 = vmatpush2.msra.mxu0 0.0
        %1588 = vmatprep.subr.mxu0 0.0
        %1589 = vmatpush2.msra.mxu0 0.0
        %1590 = vmatprep.subr.mxu0 0.0
        %1591 = vmatpush2.msra.mxu0 0.0
        %1592 = vmatprep.subr.mxu0 0.0
        %1593 = vmatpush2.msra.mxu0 0.0
        %1594 = vmatprep.subr.mxu0 0.0
        %1595 = vmatpush2.msra.mxu0 0.0
        %1596 = vmatprep.subr.mxu0 0.0
        %1597 = vmatpush2.msra.mxu0 0.0
        %1598 = vmatprep.subr.mxu0 0.0
        %1599 = vmatpush2.msra.mxu0 0.0
        %1600 = vmatprep.subr.mxu0 0.0
        %1601 = vmatpush2.msra.mxu0 0.0
        %1602 = vmatprep.subr.mxu0 0.0
        %1603 = vmatpush2.msra.mxu0 0.0
        %1604 = vmatprep.subr.mxu0 0.0
        %1605 = vmatpush2.msra.mxu0 0.0
        %1606 = vmatprep.mubr.f32.mxu0 0.0
        %1607 = vmatmul.mubr.f32.gmra.mxu0 %v1537
        %v1608 = vpop.f32.mrf.mxu0
        %v1609 = vadd.f32 %v1535, %v1608
        %v1610 = vpop.f32.mrf.mxu0
        %1611 = vmatprep.mubr.f32.mxu0 0.0
        %1612 = vmatmul.mubr.f32.gmra.mxu0 %v1540
        %v1613 = vpop.f32.mrf.mxu0
        %v1614 = vadd.f32 %v1535, %v1613
        %v1615 = vpop.f32.mrf.mxu0
        %1616 = vdwg.mxu0
        %v1617 = vld [vmem:[%s402] sm:$0xff]
        %v1618 = vld [vmem:[%s402 + $0x8] sm:$0xff]
        %v1619 = vmul.f32 %v1617, %v1609
        %v1620 = vmul.f32 %v1618, %v1614
        %1621 = vst.msk [vmem:[%s454] sm:$0xff] %vm475, %v1619
        %1622 = vst.msk [vmem:[%s454 + $0x8] sm:$0xff] %vm475, %v1620
        %s1623 = sand.u32 %s228, 1
        %s1624 = scalar_lea.sflag [#allocation4], %s1623
        %s1625 = sand.u32 %s228, 1
        %s1626 = smul.addr %s1625, 16
        %s1627 = scalar_lea.vmem [#allocation11], %s1626
        // Predicated region
        $region69: #{tpu_custom_call.1} parent=47 // pred_check
          %p1628 = pneg %p238
        $region70: #{tpu_custom_call.1} parent=47 // pred_check_branch
          %1630 = sbr.rel (%p1628) target = $region72
        $region71: #{tpu_custom_call.1} parent=47 // pred_region
          %s1631 = smul.u32 2, %s35
          %s1633 = ssub.s32 256, 256
          %1634 = vsyncadd %s1624, %s1633
          %s1635 = smul.addr %s34, 2
          %s1636 = sadd.s32 %s1631, %s1635
          %s1637 = smul.addr %s1636, 128
          %s1638 = scalar_lea.hbm %s7, %s1637
          %s1639 = sshll.u32 %s1627, 4
          %s1640 = int_to_ptr.vmem [resolvable:$true] %s1639
          %1645 = dma.vmem_to_hbm [thread:$0]  %s1640, 256, %s1638, %s1624, 128, 128, 8
        $region72: #{tpu_custom_call.1} parent=47 // pred_fallthru
          _
      $region48: #{tpu_custom_call.1} parent=5 // pred_fallthru
        _
      %p1646 = scmp.le.s32.totalorder 2, %s25
      // Predicated region
      $region73: #{tpu_custom_call.1} parent=5 // pred_check
        %p1647 = pneg %p1646
      $region74: #{tpu_custom_call.1} parent=5 // pred_check_branch
        %1649 = sbr.rel (%p1647) target = $region76
      $region75: #{tpu_custom_call.1} parent=5 // pred_region
        %s1650 = ssub.s32 %s25, 2
        // Predicated region
        $region77: #{tpu_custom_call.1} parent=75 // pred_check
          %p1651 = pneg %p244
        $region78: #{tpu_custom_call.1} parent=75 // pred_check_branch
          %1653 = sbr.rel (%p1651) target = $region80
        $region79: #{tpu_custom_call.1} parent=75 // pred_region
          %s1654 = sand.u32 %s229, 1
          %s1655 = scalar_lea.sflag [#allocation4], %s1654
          %s1656 = sand.u32 %s229, 1
          %s1657 = smul.addr %s1656, 16
          %s1658 = scalar_lea.vmem [#allocation11], %s1657
          %1659 = dma.done %s1655, 256
        $region80: #{tpu_custom_call.1} parent=75 // pred_fallthru
          _
      $region76: #{tpu_custom_call.1} parent=5 // pred_fallthru
        _
    $region6: #{tpu_custom_call.1} parent=1 // loop_footer
      %s29 = sadd.s32 1, %s25
    $region7: #{tpu_custom_call.1} parent=1 // loop_footer_branch
      %24 = sbr.rel target = $region3
    $region8: #{tpu_custom_call.1} parent=1 // loop_exit
      _
    %1660 = vsyncpa [#allocation3], 1
    %s1661 = scalar_lea.sflag [#allocation3], 1
    %1662 = vsyncpa %s1661, 1
    %1663 = vsyncpa [#allocation6], 1
    %s1664 = scalar_lea.sflag [#allocation6], 1
    %1665 = vsyncpa %s1664, 1
    %1666 = vsyncpa [#allocation9], 1
    %s1667 = scalar_lea.sflag [#allocation9], 1
    %1668 = vsyncpa %s1667, 1
    %1669 = vsyncpa [#allocation4], 1
    %s1670 = scalar_lea.sflag [#allocation4], 1
    %1671 = vsyncpa %s1670, 1

</llo_original>
